<compile_context>
chip_gen: v7x
topology: tpu7x:2x2x1
jax: 0.10.0
libtpu: 0.0.40
codegen_flags: <defaults>
</compile_context>

<pallas_src>
import jax
import jax.numpy as jnp
import numpy as np
from jax.experimental import pallas as pl
from jax.experimental.pallas import tpu as pltpu

NEG_SLOPE = 0.01  # F.leaky_relu default


def _leaky_relu(x):
    return jnp.where(x > 0, x, NEG_SLOPE * x)


# ---------------------------------------------------------------------------
# Kernel 1: fused conv0 aggregation + conv0 (w0, b0, leaky_relu) + conv1 weight.
#   z[b, n] = sum_f leaky_relu( (sum_m X^T[b, m] * A[m, n]) * w0[f] + b0[f] ) * w1[f]
# Grid: (N // tn, N // tk)  -- n-axis "parallel", k-reduction last & "arbitrary".
# ---------------------------------------------------------------------------
def _conv0_fused_kernel(cparams_ref,   # SMEM (3, h1) f32 : rows = [w0, b0, w1]
                        x_ref,         # VMEM (B, tk)  bf16  X^T block
                        a_ref,         # VMEM (tk, tn) bf16  A block
                        z_ref,         # VMEM (B, tn)  f32   output block
                        acc_ref):      # VMEM (B, tn)  f32   accumulator scratch
    k = pl.program_id(1)

    @pl.when(k == 0)
    def _():
        acc_ref[...] = jnp.zeros_like(acc_ref)

    acc_ref[...] += jnp.dot(x_ref[...], a_ref[...],
                            preferred_element_type=jnp.float32)

    @pl.when(k == pl.num_programs(1) - 1)
    def _():
        s = acc_ref[...]                       # (B, tn) conv0 aggregation, f32
        h1 = cparams_ref.shape[1]

        def body(f, z):
            w0 = cparams_ref[0, f]
            b0 = cparams_ref[1, f]
            w1 = cparams_ref[2, f]
            t = _leaky_relu(s * w0 + b0)       # conv0 (in_feats=1) + bias + leaky_relu
            return z + t * w1                  # conv1 weight: project h1 -> 1

        z = jax.lax.fori_loop(0, h1, body, jnp.zeros_like(s))
        z_ref[...] = z


# ---------------------------------------------------------------------------
# Kernel 2: conv1 aggregation restricted to node 1 (the only node forward() returns),
# plus conv1 bias and the final leaky_relu.
#   out[b] = leaky_relu( sum_n A[1, n] * z[b, n] + b1 )
# Grid: (N // tk,)  -- reduction only, "arbitrary".
# ---------------------------------------------------------------------------
def _conv1_node1_kernel(b1_ref,    # SMEM (1,) f32
                        a1_ref,    # VMEM (1, tk) f32   row 1 of A
                        z_ref,     # VMEM (B, tk) f32
                        o_ref,     # VMEM (B, 1)  f32
                        acc_ref):  # VMEM (B, 1)  f32
    k = pl.program_id(0)

    @pl.when(k == 0)
    def _():
        acc_ref[...] = jnp.zeros_like(acc_ref)

    acc_ref[...] += jnp.sum(z_ref[...] * a1_ref[...], axis=1, keepdims=True)

    @pl.when(k == pl.num_programs(0) - 1)
    def _():
        o_ref[...] = _leaky_relu(acc_ref[...] + b1_ref[0])


# ---------------------------------------------------------------------------
# Wrapper
# ---------------------------------------------------------------------------
def _pick_tile(n, candidates=(512, 256, 128)):
    for t in candidates:
        if n >= t and n % t == 0:
            return t
    return n  # small / odd N: single block along that axis


def dummy_gcn3_forward(a_norm, in_feat, params):
    """Pallas forward for DummyGCN3.

    a_norm  : (N, N) f32 symmetric normalized adjacency D^-1/2 A D^-1/2
              (undirected graph, standard GCN setting; symmetry is used so all
              matmuls run in the lane-dense transposed layout).
    in_feat : (N, B, 1) f32 node features.
    returns : (B, 1) f32 == leaky_relu(conv1(g, leaky_relu(conv0(g, in_feat))))[1]
    """
    N, B, fin = in_feat.shape
    assert fin == 1
    assert a_norm.shape == (N, N)
    h1 = params["conv0_w"].shape[1]

    tn = _pick_tile(N)
    tk = _pick_tile(N)

    # Lane-dense transposed activations; bf16 stream for the big adjacency.
    x_t = jnp.transpose(in_feat.reshape(N, B)).astype(jnp.bfloat16)      # (B, N)
    a_bf = a_norm.astype(jnp.bfloat16)                                   # (N, N)

    # conv0 / conv1 parameters packed for SMEM scalar reads: rows = [w0, b0, w1].
    cparams = jnp.stack(
        [params["conv0_w"].reshape(h1),
         params["conv0_b"].reshape(h1),
         params["conv1_w"].reshape(h1)], axis=0).astype(jnp.float32)     # (3, h1)

    z_t = pl.pallas_call(
        _conv0_fused_kernel,
        out_shape=jax.ShapeDtypeStruct((B, N), jnp.float32),
        grid=(N // tn, N // tk),
        in_specs=[
            pl.BlockSpec(memory_space=pltpu.MemorySpace.SMEM),           # cparams
            pl.BlockSpec((B, tk), lambda n, k: (0, k)),                  # X^T
            pl.BlockSpec((tk, tn), lambda n, k: (k, n)),                 # A
        ],
        out_specs=pl.BlockSpec((B, tn), lambda n, k: (0, n)),
        scratch_shapes=[pltpu.VMEM((B, tn), jnp.float32)],
        compiler_params=pltpu.CompilerParams(
            dimension_semantics=("parallel", "arbitrary"),
            vmem_limit_bytes=32 * 1024 * 1024),
    )(cparams, x_t, a_bf)                                                # (B, N) f32

    # conv1: forward() only returns node 1, so only row 1 of A is needed (exact).
    a_row1 = a_norm[1:2, :].astype(jnp.float32)                          # (1, N)
    b1 = params["conv1_b"].reshape(1).astype(jnp.float32)                # (1,)

    out = pl.pallas_call(
        _conv1_node1_kernel,
        out_shape=jax.ShapeDtypeStruct((B, 1), jnp.float32),
        grid=(N // tk,),
        in_specs=[
            pl.BlockSpec(memory_space=pltpu.MemorySpace.SMEM),           # b1
            pl.BlockSpec((1, tk), lambda k: (0, k)),                     # A row 1
            pl.BlockSpec((B, tk), lambda k: (0, k)),                     # z^T
        ],
        out_specs=pl.BlockSpec((B, 1), lambda k: (0, 0)),
        scratch_shapes=[pltpu.VMEM((B, 1), jnp.float32)],
        compiler_params=pltpu.CompilerParams(
            dimension_semantics=("arbitrary",),
            vmem_limit_bytes=32 * 1024 * 1024),
    )(b1, a_row1, z_t)                                                   # (B, 1)

    return out


# ---------------------------------------------------------------------------
# Deterministic synthetic graph / parameters + float64 numpy reference
# ---------------------------------------------------------------------------
def init_params(key, h1):
    ks = jax.random.split(key, 4)
    s = 0.05
    return {
        # DGL GraphConv weights: (in_feats, out_feats); bias: (out_feats,)
        "conv0_w": s * jax.random.normal(ks[0], (1, h1), jnp.float32),
        "conv0_b": s * jax.random.normal(ks[1], (h1,), jnp.float32),
        "conv1_w": s * jax.random.normal(ks[2], (h1, 1), jnp.float32),
        "conv1_b": s * jax.random.normal(ks[3], (1,), jnp.float32),
    }


def make_normalized_adjacency(key, num_nodes, p=0.1):
    # Dense random undirected graph; GraphConv(norm='both') normalization with
    # DGL's degree clamp(min=1).
    a = jax.random.bernoulli(key, p, (num_nodes, num_nodes)).astype(jnp.float32)
    a = jnp.maximum(a, a.T)
    a = a * (1.0 - jnp.eye(num_nodes, dtype=jnp.float32))   # no self loops
    deg = jnp.maximum(a.sum(axis=1), 1.0)
    n = deg ** -0.5
    return n[:, None] * a * n[None, :]


def reference_forward(a_norm, in_feat, params):
    """float64 numpy reference, mirroring the kernel's bf16 input rounding."""
    N, B, _ = in_feat.shape
    h1 = params["conv0_w"].shape[1]

    def bf(x):  # mirror the bf16 cast used for the streamed operands
        return np.asarray(jnp.asarray(x).astype(jnp.bfloat16).astype(jnp.float32),
                          np.float64)

    def lrelu(x):
        return np.where(x > 0, x, NEG_SLOPE * x)

    a_lo = bf(a_norm)                                   # conv0 aggregation stream (bf16)
    x_lo = bf(in_feat.reshape(N, B))
    w0 = np.asarray(params["conv0_w"], np.float64).reshape(h1)
    b0 = np.asarray(params["conv0_b"], np.float64).reshape(h1)
    w1 = np.asarray(params["conv1_w"], np.float64).reshape(h1)
    b1 = np.asarray(params["conv1_b"], np.float64).reshape(1)

    agg0 = a_lo @ x_lo                                                   # (N, B)
    h0 = lrelu(agg0[:, :, None] * w0[None, None, :] + b0[None, None, :]) # (N, B, h1)
    z = h0 @ w1                                                          # (N, B)
    a_row1 = np.asarray(a_norm, np.float64)[1, :]                        # f32 row, like kernel 2
    out = lrelu(a_row1 @ z + b1)                                         # (B,)
    return out.reshape(B, 1)


# ---------------------------------------------------------------------------
if __name__ == "__main__":
    # Small deterministic shapes (real graphs are ~16K nodes; structure identical).
    N_NODES = 1024   # -> 512x512 tiles, grid (2, 2): exercises tiling + accumulation
    B = 8            # per-node feature "batch" dim: in_feat (N, B, 1)
    H1 = 100         # DummyGCN3(h1) hidden width

    key = jax.random.PRNGKey(0)
    k_graph, k_feat, k_param = jax.random.split(key, 3)

    a_norm = make_normalized_adjacency(k_graph, N_NODES)
    in_feat = jax.random.normal(k_feat, (N_NODES, B, 1), jnp.float32)
    params = init_params(k_param, H1)

    fwd = jax.jit(dummy_gcn3_forward)
    out = jax.block_until_ready(fwd(a_norm, in_feat, params))

    assert out.shape == (B, 1), out.shape
    assert bool(jnp.all(jnp.isfinite(out)))

    ref = reference_forward(a_norm, in_feat, params)
    np.testing.assert_allclose(np.asarray(out), ref, rtol=1e-3, atol=1e-4)

    print("KERNEL_OK")
</pallas_src>

<mosaic_0001>
module attributes {stable_mosaic.version = 11 : i64} {
  func.func @_conv0_fused_kernel(%arg0: i32, %arg1: i32, %arg2: memref<3x100xf32, #tpu.memory_space<smem>>, %arg3: memref<8x512xbf16, #tpu.memory_space<vmem>>, %arg4: memref<512x512xbf16, #tpu.memory_space<vmem>>, %arg5: memref<8x512xf32, #tpu.memory_space<vmem>>, %arg6: memref<8x512xf32, #tpu.memory_space<vmem>>) attributes {dimension_semantics = [#tpu.dimension_semantics<parallel>, #tpu.dimension_semantics<arbitrary>], iteration_bounds = array<i64: 2, 2>, scalar_prefetch = 0 : i64, scratch_operands = 1 : i64, tpu.core_type = #tpu.core_type<tc>, window_params = [{transform_indices = @transform_0, window_bounds = array<i64: 3, 100>}, {transform_indices = @transform_1, window_bounds = array<i64: 8, 512>}, {transform_indices = @transform_2, window_bounds = array<i64: 512, 512>}, {transform_indices = @transform_3, window_bounds = array<i64: 8, 512>}]} {
    %c0_i32 = arith.constant 0 : i32
    %0 = arith.cmpi eq, %arg1, %c0_i32 : i32
    %1 = arith.extui %0 : i1 to i32
    %c0_i32_0 = arith.constant 0 : i32
    %2 = arith.cmpi ne, %1, %c0_i32_0 : i32
    scf.if %2 {
      %cst_9 = arith.constant 0.000000e+00 : f32
      %12 = vector.broadcast %cst_9 : f32 to vector<8x512xf32>
      %c0_10 = arith.constant 0 : index
      %c0_11 = arith.constant 0 : index
      %13 = vector.load %arg6[%c0_10, %c0_11] : memref<8x512xf32, #tpu.memory_space<vmem>>, vector<8x512xf32>
      tpu.vector_store %arg6[%c0_10, %c0_11], %12 {strides = array<i32>} : memref<8x512xf32, #tpu.memory_space<vmem>>, vector<8x512xf32>,
    } else {
    }
    %c0 = arith.constant 0 : index
    %c0_1 = arith.constant 0 : index
    %3 = vector.load %arg6[%c0, %c0_1] : memref<8x512xf32, #tpu.memory_space<vmem>>, vector<8x512xf32>
    %c0_2 = arith.constant 0 : index
    %c0_3 = arith.constant 0 : index
    %4 = vector.load %arg3[%c0_2, %c0_3] : memref<8x512xbf16, #tpu.memory_space<vmem>>, vector<8x512xbf16>
    %c0_4 = arith.constant 0 : index
    %c0_5 = arith.constant 0 : index
    %5 = vector.load %arg4[%c0_4, %c0_5] : memref<512x512xbf16, #tpu.memory_space<vmem>>, vector<512x512xbf16>
    %cst = arith.constant dense<0.000000e+00> : vector<8x512xf32>
    %6 = tpu.matmul %4, %5, %cst {dimension_numbers = #tpu.dot_dimension_numbers<[1], [0], [0], [1], [0, 0, 1, 1], [], []>} : vector<8x512xbf16>, vector<512x512xbf16>, vector<8x512xf32> -> vector<8x512xf32>
    %7 = arith.addf %3, %6 : vector<8x512xf32>
    %c0_6 = arith.constant 0 : index
    %c0_7 = arith.constant 0 : index
    %8 = vector.load %arg6[%c0_6, %c0_7] : memref<8x512xf32, #tpu.memory_space<vmem>>, vector<8x512xf32>
    tpu.vector_store %arg6[%c0_6, %c0_7], %7 {strides = array<i32>} : memref<8x512xf32, #tpu.memory_space<vmem>>, vector<8x512xf32>,
    %c1_i32 = arith.constant 1 : i32
    %9 = arith.cmpi eq, %arg1, %c1_i32 : i32
    %10 = arith.extui %9 : i1 to i32
    %c0_i32_8 = arith.constant 0 : i32
    %11 = arith.cmpi ne, %10, %c0_i32_8 : i32
    scf.if %11 {
      %c0_9 = arith.constant 0 : index
      %c0_10 = arith.constant 0 : index
      %12 = vector.load %arg6[%c0_9, %c0_10] : memref<8x512xf32, #tpu.memory_space<vmem>>, vector<8x512xf32>
      %cst_11 = arith.constant 0.000000e+00 : f32
      %13 = vector.broadcast %cst_11 : f32 to vector<8x512xf32>
      %c0_i32_12 = arith.constant 0 : i32
      %c100_i32 = arith.constant 100 : i32
      %14 = arith.addi %c0_i32_12, %c100_i32 : i32
      %c1_i32_13 = arith.constant 1 : i32
      %15 = scf.for %arg7 = %c0_i32_12 to %14 step %c1_i32_13 iter_args(%arg8 = %13) -> (vector<8x512xf32>)  : i32 {
        %c0_17 = arith.constant 0 : index
        %17 = arith.index_cast %arg7 : i32 to index
        %18 = memref.load %arg2[%c0_17, %17] : memref<3x100xf32, #tpu.memory_space<smem>>
        %c1 = arith.constant 1 : index
        %19 = arith.index_cast %arg7 : i32 to index
        %20 = memref.load %arg2[%c1, %19] : memref<3x100xf32, #tpu.memory_space<smem>>
        %c2 = arith.constant 2 : index
        %21 = arith.index_cast %arg7 : i32 to index
        %22 = memref.load %arg2[%c2, %21] : memref<3x100xf32, #tpu.memory_space<smem>>
        %23 = vector.broadcast %18 : f32 to vector<8x512xf32>
        %24 = arith.mulf %12, %23 : vector<8x512xf32>
        %25 = vector.broadcast %20 : f32 to vector<8x512xf32>
        %26 = arith.addf %24, %25 : vector<8x512xf32>
        %cst_18 = arith.constant 0.000000e+00 : f32
        %27 = vector.broadcast %cst_18 : f32 to vector<8x512xf32>
        %28 = arith.cmpf ogt, %26, %27 : vector<8x512xf32>
        %cst_19 = arith.constant 0.00999999977 : f32
        %29 = vector.broadcast %cst_19 : f32 to vector<8x512xf32>
        %30 = arith.mulf %29, %26 : vector<8x512xf32>
        %31 = arith.select %28, %26, %30 : vector<8x512xi1>, vector<8x512xf32>
        %32 = vector.broadcast %22 : f32 to vector<8x512xf32>
        %33 = arith.mulf %31, %32 : vector<8x512xf32>
        %34 = arith.addf %arg8, %33 : vector<8x512xf32>
        scf.yield %34 : vector<8x512xf32>
      }
      %c100_i32_14 = arith.constant 100 : i32
      %c0_15 = arith.constant 0 : index
      %c0_16 = arith.constant 0 : index
      %16 = vector.load %arg5[%c0_15, %c0_16] : memref<8x512xf32, #tpu.memory_space<vmem>>, vector<8x512xf32>
      tpu.vector_store %arg5[%c0_15, %c0_16], %15 {strides = array<i32>} : memref<8x512xf32, #tpu.memory_space<vmem>>, vector<8x512xf32>,
    } else {
    }
    return
  }
  func.func @transform_0(%arg0: i32, %arg1: i32) -> (i32, i32) {
    %c0_i32 = arith.constant 0 : i32
    %c0_i32_0 = arith.constant 0 : i32
    %c0_i32_1 = arith.constant 0 : i32
    return %c0_i32, %c0_i32_0 : i32, i32
  }
  func.func @transform_1(%arg0: i32, %arg1: i32) -> (i32, i32) {
    %c0_i32 = arith.constant 0 : i32
    %c0_i32_0 = arith.constant 0 : i32
    return %c0_i32, %arg1 : i32, i32
  }
  func.func @transform_2(%arg0: i32, %arg1: i32) -> (i32, i32) {
    %c0_i32 = arith.constant 0 : i32
    return %arg1, %arg0 : i32, i32
  }
  func.func @transform_3(%arg0: i32, %arg1: i32) -> (i32, i32) {
    %c0_i32 = arith.constant 0 : i32
    %c0_i32_0 = arith.constant 0 : i32
    return %c0_i32, %arg0 : i32, i32
  }
}

module attributes {stable_mosaic.version = 11 : i64} {
  func.func @_conv1_node1_kernel(%arg0: i32, %arg1: memref<1xf32, #tpu.memory_space<smem>>, %arg2: memref<1x512xf32, #tpu.memory_space<vmem>>, %arg3: memref<8x512xf32, #tpu.memory_space<vmem>>, %arg4: memref<8x1xf32, #tpu.memory_space<vmem>>, %arg5: memref<8x1xf32, #tpu.memory_space<vmem>>) attributes {dimension_semantics = [#tpu.dimension_semantics<arbitrary>], iteration_bounds = array<i64: 2>, scalar_prefetch = 0 : i64, scratch_operands = 1 : i64, tpu.core_type = #tpu.core_type<tc>, window_params = [{transform_indices = @transform_0, window_bounds = array<i64: 1>}, {transform_indices = @transform_1, window_bounds = array<i64: 1, 512>}, {transform_indices = @transform_2, window_bounds = array<i64: 8, 512>}, {pipeline_mode = #tpu.pipeline_mode<synchronous>, transform_indices = @transform_3, window_bounds = array<i64: 8, 1>}]} {
    %c0_i32 = arith.constant 0 : i32
    %0 = arith.cmpi eq, %arg0, %c0_i32 : i32
    %1 = arith.extui %0 : i1 to i32
    %c0_i32_0 = arith.constant 0 : i32
    %2 = arith.cmpi ne, %1, %c0_i32_0 : i32
    scf.if %2 {
      %cst_9 = arith.constant 0.000000e+00 : f32
      %15 = vector.broadcast %cst_9 : f32 to vector<8x1xf32>
      %c0_10 = arith.constant 0 : index
      %c0_11 = arith.constant 0 : index
      %16 = vector.load %arg5[%c0_10, %c0_11] : memref<8x1xf32, #tpu.memory_space<vmem>>, vector<8x1xf32>
      tpu.vector_store %arg5[%c0_10, %c0_11], %15 {strides = array<i32>} : memref<8x1xf32, #tpu.memory_space<vmem>>, vector<8x1xf32>,
    } else {
    }
    %c0 = arith.constant 0 : index
    %c0_1 = arith.constant 0 : index
    %3 = vector.load %arg5[%c0, %c0_1] : memref<8x1xf32, #tpu.memory_space<vmem>>, vector<8x1xf32>
    %c0_2 = arith.constant 0 : index
    %c0_3 = arith.constant 0 : index
    %4 = vector.load %arg3[%c0_2, %c0_3] : memref<8x512xf32, #tpu.memory_space<vmem>>, vector<8x512xf32>
    %c0_4 = arith.constant 0 : index
    %c0_5 = arith.constant 0 : index
    %5 = vector.load %arg2[%c0_4, %c0_5] : memref<1x512xf32, #tpu.memory_space<vmem>>, vector<1x512xf32>
    %6 = vector.broadcast %5 : vector<1x512xf32> to vector<8x512xf32>
    %7 = arith.mulf %4, %6 : vector<8x512xf32>
    %cst = arith.constant dense<0.000000e+00> : vector<8xf32>
    %8 = vector.multi_reduction <add>, %7, %cst [1] : vector<8x512xf32> to vector<8xf32>
    %9 = vector.shape_cast %8 : vector<8xf32> to vector<8x1xf32>
    %10 = arith.addf %3, %9 : vector<8x1xf32>
    %c0_6 = arith.constant 0 : index
    %c0_7 = arith.constant 0 : index
    %11 = vector.load %arg5[%c0_6, %c0_7] : memref<8x1xf32, #tpu.memory_space<vmem>>, vector<8x1xf32>
    tpu.vector_store %arg5[%c0_6, %c0_7], %10 {strides = array<i32>} : memref<8x1xf32, #tpu.memory_space<vmem>>, vector<8x1xf32>,
    %c1_i32 = arith.constant 1 : i32
    %12 = arith.cmpi eq, %arg0, %c1_i32 : i32
    %13 = arith.extui %12 : i1 to i32
    %c0_i32_8 = arith.constant 0 : i32
    %14 = arith.cmpi ne, %13, %c0_i32_8 : i32
    scf.if %14 {
      %c0_9 = arith.constant 0 : index
      %c0_10 = arith.constant 0 : index
      %15 = vector.load %arg5[%c0_9, %c0_10] : memref<8x1xf32, #tpu.memory_space<vmem>>, vector<8x1xf32>
      %c0_11 = arith.constant 0 : index
      %16 = memref.load %arg1[%c0_11] : memref<1xf32, #tpu.memory_space<smem>>
      %17 = vector.broadcast %16 : f32 to vector<8x1xf32>
      %18 = arith.addf %15, %17 : vector<8x1xf32>
      %cst_12 = arith.constant 0.000000e+00 : f32
      %19 = vector.broadcast %cst_12 : f32 to vector<8x1xf32>
      %20 = arith.cmpf ogt, %18, %19 : vector<8x1xf32>
      %cst_13 = arith.constant 0.00999999977 : f32
      %21 = vector.broadcast %cst_13 : f32 to vector<8x1xf32>
      %22 = arith.mulf %21, %18 : vector<8x1xf32>
      %23 = arith.select %20, %18, %22 : vector<8x1xi1>, vector<8x1xf32>
      %c0_14 = arith.constant 0 : index
      %c0_15 = arith.constant 0 : index
      %24 = vector.load %arg4[%c0_14, %c0_15] : memref<8x1xf32, #tpu.memory_space<vmem>>, vector<8x1xf32>
      tpu.vector_store %arg4[%c0_14, %c0_15], %23 {strides = array<i32>} : memref<8x1xf32, #tpu.memory_space<vmem>>, vector<8x1xf32>,
    } else {
    }
    return
  }
  func.func @transform_0(%arg0: i32) -> i32 {
    %c0_i32 = arith.constant 0 : i32
    %c0_i32_0 = arith.constant 0 : i32
    return %c0_i32 : i32
  }
  func.func @transform_1(%arg0: i32) -> (i32, i32) {
    %c0_i32 = arith.constant 0 : i32
    %c0_i32_0 = arith.constant 0 : i32
    return %c0_i32, %arg0 : i32, i32
  }
  func.func @transform_2(%arg0: i32) -> (i32, i32) {
    %c0_i32 = arith.constant 0 : i32
    %c0_i32_0 = arith.constant 0 : i32
    return %c0_i32, %arg0 : i32, i32
  }
  func.func @transform_3(%arg0: i32) -> (i32, i32) {
    %c0_i32 = arith.constant 0 : i32
    %c0_i32_0 = arith.constant 0 : i32
    %c0_i32_1 = arith.constant 0 : i32
    return %c0_i32, %c0_i32_0 : i32, i32
  }
}

</mosaic_0001>

<llo_original>
// kernel: dummy_gcn3_forward.3
$region0: #{dummy_gcn3_forward.3}
  #allocation0 [shape = 'u32[]', space=smem, size = 0x4, offset = 0x4, fixed_abs, tag = 'smem constant byte address 0x4 - core index']
  #allocation1 [shape = 'u32[144,128]{1,0:T(1,128)}', space=vmem, size = 0x12000, scoped, tag = 'internal scratch']
  #allocation2 [shape = 'f32[8,1]{1,0:T(8,128)}', space=vmem, size = 0x1000, scoped, tag = 'scratch operand']
  #allocation3 [shape = 'f32[1]{0:T(128)S(6)}', space=smem, size = 0x200, scoped, tag = 'scoped memory for dummy_gcn3_forward.3']
  %s0 = inlined_call_operand.<no memory space> [shape: f32[1], index: 0, kind: input, shape index: {}]
  %s1 = inlined_call_operand.vmem [shape: f32[1,1024], index: 1, kind: input, shape index: {}]
  %s2 = inlined_call_operand.vmem [shape: f32[8,1024], index: 2, kind: input, shape index: {}]
  %s3 = inlined_call_operand.vmem [shape: f32[8,1], index: 3, kind: output, shape index: {}]
  %s4 = sld [smem:[#allocation0]]
  $region53: #{dummy_gcn3_forward.3} parent=0
    _
  %s6 = ssub.s32 1, %s4
  %s7 = scalar_select 0, %s6, %s4
  %8 = sst [smem:[#allocation3]] %s0
  loop: start=0, step=1, limit=4
  $region2: #{dummy_gcn3_forward.3} parent=0 // loop_pre_header
    _
  $region3: #{dummy_gcn3_forward.3} parent=0 // loop_header
    %s10 = sphi 0, %s14
    %p11 = scmp.ge.s32.totalorder %s10, 4
    %s18 = sphi 0, %s18
    %s20 = sphi 0, %s18
    %s21 = sphi 0, %s20
    %s35 = sphi 0, %s21
    %s41 = sphi 0, %s43
    %s44 = sphi 0, %s41
    %s45 = sphi 0, %s44
    %s61 = sphi 0, %s45
    %s67 = sphi 0, %s69
    %s70 = sphi 0, %s67
    %s71 = sphi 0, %s70
    %s87 = sphi 0, %s71
    %s91 = sphi 0, %s91
    %s93 = sphi 0, %s91
    %s94 = sphi 0, %s93
    %s108 = sphi 0, %s94
  $region4: #{dummy_gcn3_forward.3} parent=0 // loop_header_branch
    %13 = sbr.rel (%p11) target = $region8
  $region5: #{dummy_gcn3_forward.3} parent=0 // loop_body
    %s15 = ssub.s32 %s10, 1
    %s16 = ssub.s32 %s10, 2
    %s17 = sadd.s32 %s10, 1
    %s19 = sadd.s32 %s18, 1
    %p22 = scmp.eq.s32.totalorder %s10, 1
    %p23 = scmp.ne.s32.totalorder %s18, %s20
    %p24 = scmp.eq.s32.totalorder %s10, 0
    %p25 = por %p23, %p24
    %p26 = scmp.ne.s32.totalorder %s18, %s20
    %p27 = scmp.eq.s32.totalorder %s15, 1
    %p28 = por %p26, %p27
    %p29 = scmp.ne.s32.totalorder %s20, %s21
    %p30 = scmp.eq.s32.totalorder %s15, 0
    %p31 = por %p29, %p30
    %p32 = scmp.ne.s32.totalorder %s20, %s21
    %p33 = scmp.eq.s32.totalorder %s16, 1
    %p34 = por %p32, %p33
    %p36 = scmp.ne.s32.totalorder %s21, %s35
    %p37 = scmp.eq.s32.totalorder %s16, 0
    %p38 = por %p36, %p37
    %s39 = ssub.s32 %s10, %s17
    %p40 = scmp.eq.s32.totalorder %s39, 0
    %s42 = sadd.s32 %s41, 1
    %s43 = scalar_select %p40, %s41, %s42
    %p46 = pneg %p40
    %p47 = scmp.eq.s32.totalorder %s10, 1
    %p48 = por %p46, %p47
    %p49 = scmp.ne.s32.totalorder %s41, %s44
    %p50 = scmp.eq.s32.totalorder %s10, 0
    %p51 = por %p49, %p50
    %p52 = scmp.ne.s32.totalorder %s41, %s44
    %p53 = scmp.eq.s32.totalorder %s15, 1
    %p54 = por %p52, %p53
    %p55 = scmp.ne.s32.totalorder %s44, %s45
    %p56 = scmp.eq.s32.totalorder %s15, 0
    %p57 = por %p55, %p56
    %p58 = scmp.ne.s32.totalorder %s44, %s45
    %p59 = scmp.eq.s32.totalorder %s16, 1
    %p60 = por %p58, %p59
    %p62 = scmp.ne.s32.totalorder %s45, %s61
    %p63 = scmp.eq.s32.totalorder %s16, 0
    %p64 = por %p62, %p63
    %s65 = ssub.s32 %s10, %s17
    %p66 = scmp.eq.s32.totalorder %s65, 0
    %s68 = sadd.s32 %s67, 1
    %s69 = scalar_select %p66, %s67, %s68
    %p72 = pneg %p66
    %p73 = scmp.eq.s32.totalorder %s10, 1
    %p74 = por %p72, %p73
    %p75 = scmp.ne.s32.totalorder %s67, %s70
    %p76 = scmp.eq.s32.totalorder %s10, 0
    %p77 = por %p75, %p76
    %p78 = scmp.ne.s32.totalorder %s67, %s70
    %p79 = scmp.eq.s32.totalorder %s15, 1
    %p80 = por %p78, %p79
    %p81 = scmp.ne.s32.totalorder %s70, %s71
    %p82 = scmp.eq.s32.totalorder %s15, 0
    %p83 = por %p81, %p82
    %p84 = scmp.ne.s32.totalorder %s70, %s71
    %p85 = scmp.eq.s32.totalorder %s16, 1
    %p86 = por %p84, %p85
    %p88 = scmp.ne.s32.totalorder %s71, %s87
    %p89 = scmp.eq.s32.totalorder %s16, 0
    %p90 = por %p88, %p89
    %s92 = sadd.s32 %s91, 1
    %p95 = scmp.eq.s32.totalorder %s10, 1
    %p96 = scmp.ne.s32.totalorder %s91, %s93
    %p97 = scmp.eq.s32.totalorder %s10, 0
    %p98 = por %p96, %p97
    %p99 = scmp.ne.s32.totalorder %s91, %s93
    %p100 = scmp.eq.s32.totalorder %s15, 1
    %p101 = por %p99, %p100
    %p102 = scmp.ne.s32.totalorder %s93, %s94
    %p103 = scmp.eq.s32.totalorder %s15, 0
    %p104 = por %p102, %p103
    %p105 = scmp.ne.s32.totalorder %s93, %s94
    %p106 = scmp.eq.s32.totalorder %s16, 1
    %p107 = por %p105, %p106
    %p109 = scmp.ne.s32.totalorder %s94, %s108
    %p110 = scmp.eq.s32.totalorder %s16, 0
    %p111 = por %p109, %p110
    %p112 = scmp.le.s32.totalorder 1, %s10
    %p113 = scmp.lt.s32.totalorder %s10, 3
    %p114 = pnand %p112, %p113
    %p115 = pneg %p114
    // Predicated region
    $region9: #{dummy_gcn3_forward.3} parent=5 // pred_check
      _
    $region10: #{dummy_gcn3_forward.3} parent=5 // pred_check_branch
      %117 = sbr.rel (%p114) target = $region12
    $region11: #{dummy_gcn3_forward.3} parent=5 // pred_region
      %s118 = ssub.s32 %s10, 1
      // Predicated region
      $region13: #{dummy_gcn3_forward.3} parent=11 // pred_check
        %p119 = pneg %p31
      $region14: #{dummy_gcn3_forward.3} parent=11 // pred_check_branch
        %121 = sbr.rel (%p119) target = $region16
      $region15: #{dummy_gcn3_forward.3} parent=11 // pred_region
        _
      $region16: #{dummy_gcn3_forward.3} parent=11 // pred_fallthru
        _
    $region12: #{dummy_gcn3_forward.3} parent=5 // pred_fallthru
      _
    %p122 = scmp.lt.s32.totalorder %s10, 2
    // Predicated region
    $region17: #{dummy_gcn3_forward.3} parent=5 // pred_check
      %p123 = pneg %p122
    $region18: #{dummy_gcn3_forward.3} parent=5 // pred_check_branch
      %125 = sbr.rel (%p123) target = $region20
    $region19: #{dummy_gcn3_forward.3} parent=5 // pred_region
      // Predicated region
      $region21: #{dummy_gcn3_forward.3} parent=19 // pred_check
        %p126 = pneg %p51
      $region22: #{dummy_gcn3_forward.3} parent=19 // pred_check_branch
        %128 = sbr.rel (%p126) target = $region24
      $region23: #{dummy_gcn3_forward.3} parent=19 // pred_region
        %s129 = smul.u32 4, %s10
        %p130 = scmp.lt.s32.totalorder %s129, 7
        %s131 = scalar_select %p130, %s129, 7
        %s132 = scalar_lea.vmem %s1, %s131
        %s133 = smul.u32 4, %s10
      $region24: #{dummy_gcn3_forward.3} parent=19 // pred_fallthru
        _
      // Predicated region
      $region25: #{dummy_gcn3_forward.3} parent=19 // pred_check
        %p134 = pneg %p77
      $region26: #{dummy_gcn3_forward.3} parent=19 // pred_check_branch
        %136 = sbr.rel (%p134) target = $region28
      $region27: #{dummy_gcn3_forward.3} parent=19 // pred_region
        %s137 = smul.u32 4, %s10
        %p138 = scmp.lt.s32.totalorder %s137, 7
        %s139 = scalar_select %p138, %s137, 7
        %s140 = smul.addr %s139, 8
        %s141 = scalar_lea.vmem %s2, %s140
        %s142 = smul.u32 4, %s10
      $region28: #{dummy_gcn3_forward.3} parent=19 // pred_fallthru
        _
    $region20: #{dummy_gcn3_forward.3} parent=5 // pred_fallthru
      _
    %p143 = scmp.le.s32.totalorder 1, %s10
    %p144 = scmp.lt.s32.totalorder %s10, 3
    %p145 = pnand %p143, %p144
    %p146 = pneg %p145
    // Predicated region
    $region29: #{dummy_gcn3_forward.3} parent=5 // pred_check
      _
    $region30: #{dummy_gcn3_forward.3} parent=5 // pred_check_branch
      %148 = sbr.rel (%p145) target = $region32
    $region31: #{dummy_gcn3_forward.3} parent=5 // pred_region
      %s149 = ssub.s32 %s10, 1
      %p150 = pneg %p31
      %p151 = pneg %p28
      %s152 = smul.u32 4, %s15
      %p153 = scmp.lt.s32.totalorder %s152, 7
      %s154 = scalar_select %p153, %s152, 7
      %s155 = scalar_lea.vmem %s1, %s154
      %p156 = pneg %p57
      %p157 = pneg %p54
      %s158 = smul.u32 4, %s15
      %p159 = scmp.lt.s32.totalorder %s158, 7
      %s160 = scalar_select %p159, %s158, 7
      %s161 = smul.addr %s160, 8
      %s162 = scalar_lea.vmem %s2, %s161
      %p163 = pneg %p83
      %p164 = pneg %p80
      %p165 = pneg %p104
      %p166 = pneg %p101
      %s167 = smul.u32 4, %s15
      %p168 = scmp.lt.s32.totalorder %s167, 7
      %s169 = scalar_select %p168, %s167, 7
      %s170 = scalar_lea.vmem %s1, %s169
      %s171 = smul.u32 4, %s15
      %s172 = smul.u32 4, %s15
      %p173 = scmp.lt.s32.totalorder %s172, 7
      %s174 = scalar_select %p173, %s172, 7
      %s175 = smul.addr %s174, 8
      %s176 = scalar_lea.vmem %s2, %s175
      %s177 = smul.u32 4, %s15
      %p178 = scmp.eq.s32.totalorder %s15, 0
      // Predicated region
      $region33: #{dummy_gcn3_forward.3} parent=31 // pred_check
        %p179 = pneg %p178
      $region34: #{dummy_gcn3_forward.3} parent=31 // pred_check_branch
        %181 = sbr.rel (%p179) target = $region36
      $region35: #{dummy_gcn3_forward.3} parent=31 // pred_region
        %vm182 = vcmask 7168
        %183 = vst.msk [vmem:[#allocation2] sm:$0xff] %vm182, 0.0
      $region36: #{dummy_gcn3_forward.3} parent=31 // pred_fallthru
        _
      %v184 = vld [vmem:[#allocation2] sm:$0xff]
      %v185 = vld [vmem:[%s176] sm:$0xff]
      %v186 = vld [vmem:[%s176 + $0x8] sm:$0xff]
      %v187 = vld [vmem:[%s176 + $0x10] sm:$0xff]
      %v188 = vld [vmem:[%s176 + $0x18] sm:$0xff]
      %v189 = vld [vmem:[%s170] sm:$0xf]
      %v191 = vlaneseq
      %v192 = vshrl.u32 %v191, 7
      %v193 = vsub.s32 0, %v192
      %v194 = vrot.slane %v189, %v193
      %v195 = vlaneseq
      %v196 = vshrl.u32 %v195, 7
      %v197 = vsub.s32 1, %v196
      %v198 = vrot.slane %v189, %v197
      %v199 = vlaneseq
      %v200 = vshrl.u32 %v199, 7
      %v201 = vsub.s32 2, %v200
      %v202 = vrot.slane %v189, %v201
      %v203 = vlaneseq
      %v204 = vshrl.u32 %v203, 7
      %v205 = vsub.s32 3, %v204
      %v206 = vrot.slane %v189, %v205
      %v211 = vmul.f32 %v185, %v194
      %v212 = vmul.f32 %v186, %v198
      %v213 = vmul.f32 %v187, %v202
      %v214 = vmul.f32 %v188, %v206
      %v215 = vadd.f32 %v211, %v212
      %v216 = vadd.f32 %v215, %v213
      %v217 = vadd.f32 %v216, %v214
      %218 = vadd.xlane.f32.xlu0 %v217
      %v219 = vpop.xlane.xlu0 %218
      %v220 = vadd.f32 %v184, %v219
      %vm221 = vcmask 7168
      %222 = vst.msk [vmem:[#allocation2] sm:$0xff] %vm221, %v220
      %p223 = scmp.eq.s32.totalorder %s15, 1
      // Predicated region
      $region37: #{dummy_gcn3_forward.3} parent=31 // pred_check
        %p224 = pneg %p223
      $region38: #{dummy_gcn3_forward.3} parent=31 // pred_check_branch
        %226 = sbr.rel (%p224) target = $region40
      $region39: #{dummy_gcn3_forward.3} parent=31 // pred_region
        %v227 = vld [vmem:[#allocation2] sm:$0xff]
        %s228 = sld [smem:[#allocation3]]
        %v229 = vstv %s228
        %v230 = vadd.f32 %v227, %v229
        %vm231 = vcmp.gt.f32.partialorder %v230, 0.0
        %v232 = vmul.f32 %v230, 0.01
        %v233 = vsel %vm231, %v230, %v232
        %234 = vst.msk [vmem:[%s3] sm:$0xff] %vm221, %v233
      $region40: #{dummy_gcn3_forward.3} parent=31 // pred_fallthru
        _
      // Predicated region
      $region41: #{dummy_gcn3_forward.3} parent=31 // pred_check
        %p235 = pneg %p101
      $region42: #{dummy_gcn3_forward.3} parent=31 // pred_check_branch
        %237 = sbr.rel (%p235) target = $region44
      $region43: #{dummy_gcn3_forward.3} parent=31 // pred_region
        _
      $region44: #{dummy_gcn3_forward.3} parent=31 // pred_fallthru
        _
      // Predicated region
      $region45: #{dummy_gcn3_forward.3} parent=31 // pred_check
        %p238 = pneg %p101
      $region46: #{dummy_gcn3_forward.3} parent=31 // pred_check_branch
        %240 = sbr.rel (%p238) target = $region48
      $region47: #{dummy_gcn3_forward.3} parent=31 // pred_region
        _
      $region48: #{dummy_gcn3_forward.3} parent=31 // pred_fallthru
        _
    $region32: #{dummy_gcn3_forward.3} parent=5 // pred_fallthru
      _
    %p241 = scmp.le.s32.totalorder 2, %s10
    // Predicated region
    $region49: #{dummy_gcn3_forward.3} parent=5 // pred_check
      %p242 = pneg %p241
    $region50: #{dummy_gcn3_forward.3} parent=5 // pred_check_branch
      %244 = sbr.rel (%p242) target = $region52
    $region51: #{dummy_gcn3_forward.3} parent=5 // pred_region
      %s245 = ssub.s32 %s10, 2
    $region52: #{dummy_gcn3_forward.3} parent=5 // pred_fallthru
      _
  $region6: #{dummy_gcn3_forward.3} parent=0 // loop_footer
    %s14 = sadd.s32 1, %s10
  $region7: #{dummy_gcn3_forward.3} parent=0 // loop_footer_branch
    %9 = sbr.rel target = $region3
  $region8: #{dummy_gcn3_forward.3} parent=0 // loop_exit
    _

// kernel: dummy_gcn3_forward.2
$region0: #{dummy_gcn3_forward.2}
  #allocation0 [shape = 'u32[]', space=smem, size = 0x4, offset = 0x4, fixed_abs, tag = 'smem constant byte address 0x4 - core index']
  #allocation1 [shape = 'u32[144,128]{1,0:T(1,128)}', space=vmem, size = 0x12000, scoped, tag = 'internal scratch']
  #allocation2 [shape = 'f32[8,512]{1,0:T(8,128)}', space=vmem, size = 0x4000, scoped, tag = 'scratch operand']
  %s0 = inlined_call_operand.vmem [shape: f32[3,100], index: 0, kind: input, shape index: {}]
  %s1 = inlined_call_operand.vmem [shape: bf16[8,1024], index: 1, kind: input, shape index: {}]
  %s2 = inlined_call_operand.vmem [shape: bf16[1024,1024], index: 2, kind: input, shape index: {}]
  %s3 = inlined_call_operand.vmem [shape: f32[8,1024], index: 3, kind: output, shape index: {}]
  %s4 = sld [smem:[#allocation0]]
  $region87: #{dummy_gcn3_forward.2} parent=0
    _
  %s6 = ssub.s32 1, %s4
  %s7 = scalar_select 0, %s6, %s4
  $region1: #{dummy_gcn3_forward.2} parent=0
    #allocation3 [shape = 'u8[2048]{0}', space=smem, size = 0x800, scoped, tag = 'input window, operand 0, single buffered']
    #allocation4 [shape = 's32[2]{0}', space=sflag, size = 0x8, scoped, tag = 'scoped memory for dummy_gcn3_forward.2']
    #allocation5 [shape = 'u8[1048576]{0}', space=vmem, size = 0x100000, scoped, tag = 'input window, operand 2']
    %8 = vsyncpa [#allocation4], 0
    loop: start=0, step=1, limit=6
    $region2: #{dummy_gcn3_forward.2} parent=1 // loop_pre_header
      _
    $region3: #{dummy_gcn3_forward.2} parent=1 // loop_header
      %s10 = sphi 0, %s14
      %p11 = scmp.ge.s32.totalorder %s10, 6
      %s17 = sphi 0, %s29
      %s18 = sphi 0, %s25
      %s19 = sphi 0, %s17
      %s20 = sphi 0, %s18
      %s21 = sphi 0, %s19
      %s22 = sphi 0, %s20
      %s30 = sphi 0, %s30
      %s32 = sphi 0, %s30
      %s33 = sphi 0, %s32
      %s47 = sphi 0, %s33
      %s53 = sphi 0, %s55
      %s56 = sphi 0, %s53
      %s57 = sphi 0, %s56
      %s73 = sphi 0, %s57
      %s81 = sphi 0, %s83
      %s84 = sphi 0, %s81
      %s85 = sphi 0, %s84
      %s101 = sphi 0, %s85
      %s107 = sphi 0, %s109
      %s110 = sphi 0, %s107
      %s111 = sphi 0, %s110
      %s127 = sphi 0, %s111
    $region4: #{dummy_gcn3_forward.2} parent=1 // loop_header_branch
      %13 = sbr.rel (%p11) target = $region8
    $region5: #{dummy_gcn3_forward.2} parent=1 // loop_body
      %s15 = ssub.s32 %s10, 1
      %s16 = ssub.s32 %s10, 2
      %s23 = sadd.s32 1, %s18
      %p24 = scmp.ge.s32.totalorder %s23, 2
      %s25 = scalar_select %p24, 0, %s23
      %s26 = sadd.s32 1, %s17
      %s27 = scalar_select %p24, %s26, %s17
      %p28 = scmp.ge.s32.totalorder %s27, 2
      %s29 = scalar_select %p28, 0, %s27
      %s31 = sadd.s32 %s30, 1
      %p34 = scmp.eq.s32.totalorder %s10, 3
      %p35 = scmp.ne.s32.totalorder %s30, %s32
      %p36 = scmp.eq.s32.totalorder %s10, 0
      %p37 = por %p35, %p36
      %p38 = scmp.ne.s32.totalorder %s30, %s32
      %p39 = scmp.eq.s32.totalorder %s15, 3
      %p40 = por %p38, %p39
      %p41 = scmp.ne.s32.totalorder %s32, %s33
      %p42 = scmp.eq.s32.totalorder %s15, 0
      %p43 = por %p41, %p42
      %p44 = scmp.ne.s32.totalorder %s32, %s33
      %p45 = scmp.eq.s32.totalorder %s16, 3
      %p46 = por %p44, %p45
      %p48 = scmp.ne.s32.totalorder %s33, %s47
      %p49 = scmp.eq.s32.totalorder %s16, 0
      %p50 = por %p48, %p49
      %s51 = ssub.s32 %s18, %s25
      %p52 = scmp.eq.s32.totalorder %s51, 0
      %s54 = sadd.s32 %s53, 1
      %s55 = scalar_select %p52, %s53, %s54
      %p58 = pneg %p52
      %p59 = scmp.eq.s32.totalorder %s10, 3
      %p60 = por %p58, %p59
      %p61 = scmp.ne.s32.totalorder %s53, %s56
      %p62 = scmp.eq.s32.totalorder %s10, 0
      %p63 = por %p61, %p62
      %p64 = scmp.ne.s32.totalorder %s53, %s56
      %p65 = scmp.eq.s32.totalorder %s15, 3
      %p66 = por %p64, %p65
      %p67 = scmp.ne.s32.totalorder %s56, %s57
      %p68 = scmp.eq.s32.totalorder %s15, 0
      %p69 = por %p67, %p68
      %p70 = scmp.ne.s32.totalorder %s56, %s57
      %p71 = scmp.eq.s32.totalorder %s16, 3
      %p72 = por %p70, %p71
      %p74 = scmp.ne.s32.totalorder %s57, %s73
      %p75 = scmp.eq.s32.totalorder %s16, 0
      %p76 = por %p74, %p75
      %s77 = ssub.s32 %s18, %s25
      %s78 = ssub.s32 %s17, %s29
      %s79 = sor.u32 %s77, %s78
      %p80 = scmp.eq.s32.totalorder %s79, 0
      %s82 = sadd.s32 %s81, 1
      %s83 = scalar_select %p80, %s81, %s82
      %p86 = pneg %p80
      %p87 = scmp.eq.s32.totalorder %s10, 3
      %p88 = por %p86, %p87
      %p89 = scmp.ne.s32.totalorder %s81, %s84
      %p90 = scmp.eq.s32.totalorder %s10, 0
      %p91 = por %p89, %p90
      %p92 = scmp.ne.s32.totalorder %s81, %s84
      %p93 = scmp.eq.s32.totalorder %s15, 3
      %p94 = por %p92, %p93
      %p95 = scmp.ne.s32.totalorder %s84, %s85
      %p96 = scmp.eq.s32.totalorder %s15, 0
      %p97 = por %p95, %p96
      %p98 = scmp.ne.s32.totalorder %s84, %s85
      %p99 = scmp.eq.s32.totalorder %s16, 3
      %p100 = por %p98, %p99
      %p102 = scmp.ne.s32.totalorder %s85, %s101
      %p103 = scmp.eq.s32.totalorder %s16, 0
      %p104 = por %p102, %p103
      %s105 = ssub.s32 %s17, %s29
      %p106 = scmp.eq.s32.totalorder %s105, 0
      %s108 = sadd.s32 %s107, 1
      %s109 = scalar_select %p106, %s107, %s108
      %p112 = pneg %p106
      %p113 = scmp.eq.s32.totalorder %s10, 3
      %p114 = por %p112, %p113
      %p115 = scmp.ne.s32.totalorder %s107, %s110
      %p116 = scmp.eq.s32.totalorder %s10, 0
      %p117 = por %p115, %p116
      %p118 = scmp.ne.s32.totalorder %s107, %s110
      %p119 = scmp.eq.s32.totalorder %s15, 3
      %p120 = por %p118, %p119
      %p121 = scmp.ne.s32.totalorder %s110, %s111
      %p122 = scmp.eq.s32.totalorder %s15, 0
      %p123 = por %p121, %p122
      %p124 = scmp.ne.s32.totalorder %s110, %s111
      %p125 = scmp.eq.s32.totalorder %s16, 3
      %p126 = por %p124, %p125
      %p128 = scmp.ne.s32.totalorder %s111, %s127
      %p129 = scmp.eq.s32.totalorder %s16, 0
      %p130 = por %p128, %p129
      %p131 = scmp.le.s32.totalorder 1, %s10
      %p132 = scmp.lt.s32.totalorder %s10, 5
      %p133 = pnand %p131, %p132
      %p134 = pneg %p133
      // Predicated region
      $region9: #{dummy_gcn3_forward.2} parent=5 // pred_check
        _
      $region10: #{dummy_gcn3_forward.2} parent=5 // pred_check_branch
        %136 = sbr.rel (%p133) target = $region12
      $region11: #{dummy_gcn3_forward.2} parent=5 // pred_region
        %s137 = ssub.s32 %s10, 1
        // Predicated region
        $region13: #{dummy_gcn3_forward.2} parent=11 // pred_check
          %p138 = pneg %p43
        $region14: #{dummy_gcn3_forward.2} parent=11 // pred_check_branch
          %140 = sbr.rel (%p138) target = $region16
        $region15: #{dummy_gcn3_forward.2} parent=11 // pred_region
          %s142 = ssub.s32 64, 64
          %143 = vsyncadd [#allocation4], %s142
          %s145 = sshll.u32 %s0, 4
          %s146 = int_to_ptr.vmem [resolvable:$true] %s145
          %148 = dma.vmem_to_smem %s146, 64, [#allocation3], [#allocation4]
        $region16: #{dummy_gcn3_forward.2} parent=11 // pred_fallthru
          _
      $region12: #{dummy_gcn3_forward.2} parent=5 // pred_fallthru
        _
      %p149 = scmp.lt.s32.totalorder %s10, 4
      // Predicated region
      $region17: #{dummy_gcn3_forward.2} parent=5 // pred_check
        %p150 = pneg %p149
      $region18: #{dummy_gcn3_forward.2} parent=5 // pred_check_branch
        %152 = sbr.rel (%p150) target = $region20
      $region19: #{dummy_gcn3_forward.2} parent=5 // pred_region
        // Predicated region
        $region21: #{dummy_gcn3_forward.2} parent=19 // pred_check
          %p153 = pneg %p63
        $region22: #{dummy_gcn3_forward.2} parent=19 // pred_check_branch
          %155 = sbr.rel (%p153) target = $region24
        $region23: #{dummy_gcn3_forward.2} parent=19 // pred_region
          %s156 = smul.u32 4, %s18
          %p157 = scmp.lt.s32.totalorder %s156, 7
          %s158 = scalar_select %p157, %s156, 7
          %s159 = smul.addr %s158, 4
          %s160 = scalar_lea.vmem %s1, %s159
          %s161 = smul.u32 4, %s18
        $region24: #{dummy_gcn3_forward.2} parent=19 // pred_fallthru
          _
        // Predicated region
        $region25: #{dummy_gcn3_forward.2} parent=19 // pred_check
          %p162 = pneg %p91
        $region26: #{dummy_gcn3_forward.2} parent=19 // pred_check_branch
          %164 = sbr.rel (%p162) target = $region28
        $region27: #{dummy_gcn3_forward.2} parent=19 // pred_region
          %s165 = sand.u32 %s81, 1
          %s166 = sand.u32 %s81, 1
          %s167 = smul.addr %s166, 1024
          %s168 = scalar_lea.vmem [#allocation5], %s167
          %s169 = smul.u32 64, %s18
          %s170 = smul.u32 4, %s17
          %s171 = smul.addr %s169, 8
          %s172 = sadd.s32 %s170, %s171
          %s173 = smul.addr %s172, 4
          %s174 = scalar_lea.vmem %s2, %s173
          // Predicated region
          $region29: #{dummy_gcn3_forward.2} parent=27 // pred_check
            _
          $region30: #{dummy_gcn3_forward.2} parent=27 // pred_check_branch
            %176 = sbr.rel (0) target = $region32
          $region31: #{dummy_gcn3_forward.2} parent=27 // pred_region
            // Predicated region
            $region33: #{dummy_gcn3_forward.2} parent=31 // pred_check
              _
            $region34: #{dummy_gcn3_forward.2} parent=31 // pred_check_branch
              %178 = sbr.rel (0) target = $region36
            $region35: #{dummy_gcn3_forward.2} parent=31 // pred_region
              loop: start=0, step=1, limit=1
              $region37: #{dummy_gcn3_forward.2} parent=35 // loop_pre_header
                _
              $region38: #{dummy_gcn3_forward.2} parent=35 // loop_header
                %s180 = sphi 0, %s184
                %p181 = scmp.ge.s32.totalorder %s180, 1
                %s185 = sphi %s174, %s174
                %s186 = sphi %s168, %s168
              $region39: #{dummy_gcn3_forward.2} parent=35 // loop_header_branch
                %183 = sbr.rel (%p181) target = $region43
              $region40: #{dummy_gcn3_forward.2} parent=35 // loop_body
                %v187 = vld [vmem:[%s185] sm:$0xff]
                %188 = vst [vmem:[%s186] sm:$0xff] %v187
                %v189 = vld [vmem:[%s185 + $0x8] sm:$0xff]
                %190 = vst [vmem:[%s186 + $0x8] sm:$0xff] %v189
                %v191 = vld [vmem:[%s185 + $0x20] sm:$0xff]
                %192 = vst [vmem:[%s186 + $0x10] sm:$0xff] %v191
                %v193 = vld [vmem:[%s185 + $0x28] sm:$0xff]
                %194 = vst [vmem:[%s186 + $0x18] sm:$0xff] %v193
                %v195 = vld [vmem:[%s185 + $0x40] sm:$0xff]
                %196 = vst [vmem:[%s186 + $0x20] sm:$0xff] %v195
                %v197 = vld [vmem:[%s185 + $0x48] sm:$0xff]
                %198 = vst [vmem:[%s186 + $0x28] sm:$0xff] %v197
                %v199 = vld [vmem:[%s185 + $0x60] sm:$0xff]
                %200 = vst [vmem:[%s186 + $0x30] sm:$0xff] %v199
                %v201 = vld [vmem:[%s185 + $0x68] sm:$0xff]
                %202 = vst [vmem:[%s186 + $0x38] sm:$0xff] %v201
                %v203 = vld [vmem:[%s185 + $0x80] sm:$0xff]
                %204 = vst [vmem:[%s186 + $0x40] sm:$0xff] %v203
                %v205 = vld [vmem:[%s185 + $0x88] sm:$0xff]
                %206 = vst [vmem:[%s186 + $0x48] sm:$0xff] %v205
                %v207 = vld [vmem:[%s185 + $0xa0] sm:$0xff]
                %208 = vst [vmem:[%s186 + $0x50] sm:$0xff] %v207
                %v209 = vld [vmem:[%s185 + $0xa8] sm:$0xff]
                %210 = vst [vmem:[%s186 + $0x58] sm:$0xff] %v209
                %v211 = vld [vmem:[%s185 + $0xc0] sm:$0xff]
                %212 = vst [vmem:[%s186 + $0x60] sm:$0xff] %v211
                %v213 = vld [vmem:[%s185 + $0xc8] sm:$0xff]
                %214 = vst [vmem:[%s186 + $0x68] sm:$0xff] %v213
                %v215 = vld [vmem:[%s185 + $0xe0] sm:$0xff]
                %216 = vst [vmem:[%s186 + $0x70] sm:$0xff] %v215
                %v217 = vld [vmem:[%s185 + $0xe8] sm:$0xff]
                %218 = vst [vmem:[%s186 + $0x78] sm:$0xff] %v217
                %v219 = vld [vmem:[%s185 + $0x100] sm:$0xff]
                %220 = vst [vmem:[%s186 + $0x80] sm:$0xff] %v219
                %v221 = vld [vmem:[%s185 + $0x108] sm:$0xff]
                %222 = vst [vmem:[%s186 + $0x88] sm:$0xff] %v221
                %v223 = vld [vmem:[%s185 + $0x120] sm:$0xff]
                %224 = vst [vmem:[%s186 + $0x90] sm:$0xff] %v223
                %v225 = vld [vmem:[%s185 + $0x128] sm:$0xff]
                %226 = vst [vmem:[%s186 + $0x98] sm:$0xff] %v225
                %v227 = vld [vmem:[%s185 + $0x140] sm:$0xff]
                %228 = vst [vmem:[%s186 + $0xa0] sm:$0xff] %v227
                %v229 = vld [vmem:[%s185 + $0x148] sm:$0xff]
                %230 = vst [vmem:[%s186 + $0xa8] sm:$0xff] %v229
                %v231 = vld [vmem:[%s185 + $0x160] sm:$0xff]
                %232 = vst [vmem:[%s186 + $0xb0] sm:$0xff] %v231
                %v233 = vld [vmem:[%s185 + $0x168] sm:$0xff]
                %234 = vst [vmem:[%s186 + $0xb8] sm:$0xff] %v233
                %v235 = vld [vmem:[%s185 + $0x180] sm:$0xff]
                %236 = vst [vmem:[%s186 + $0xc0] sm:$0xff] %v235
                %v237 = vld [vmem:[%s185 + $0x188] sm:$0xff]
                %238 = vst [vmem:[%s186 + $0xc8] sm:$0xff] %v237
                %v239 = vld [vmem:[%s185 + $0x1a0] sm:$0xff]
                %240 = vst [vmem:[%s186 + $0xd0] sm:$0xff] %v239
                %v241 = vld [vmem:[%s185 + $0x1a8] sm:$0xff]
                %242 = vst [vmem:[%s186 + $0xd8] sm:$0xff] %v241
                %v243 = vld [vmem:[%s185 + $0x1c0] sm:$0xff]
                %244 = vst [vmem:[%s186 + $0xe0] sm:$0xff] %v243
                %v245 = vld [vmem:[%s185 + $0x1c8] sm:$0xff]
                %246 = vst [vmem:[%s186 + $0xe8] sm:$0xff] %v245
                %v247 = vld [vmem:[%s185 + $0x1e0] sm:$0xff]
                %248 = vst [vmem:[%s186 + $0xf0] sm:$0xff] %v247
                %v249 = vld [vmem:[%s185 + $0x1e8] sm:$0xff]
                %250 = vst [vmem:[%s186 + $0xf8] sm:$0xff] %v249
                %v251 = vld [vmem:[%s185 + $0x200] sm:$0xff]
                %252 = vst [vmem:[%s186 + $0x100] sm:$0xff] %v251
                %v253 = vld [vmem:[%s185 + $0x208] sm:$0xff]
                %254 = vst [vmem:[%s186 + $0x108] sm:$0xff] %v253
                %v255 = vld [vmem:[%s185 + $0x220] sm:$0xff]
                %256 = vst [vmem:[%s186 + $0x110] sm:$0xff] %v255
                %v257 = vld [vmem:[%s185 + $0x228] sm:$0xff]
                %258 = vst [vmem:[%s186 + $0x118] sm:$0xff] %v257
                %v259 = vld [vmem:[%s185 + $0x240] sm:$0xff]
                %260 = vst [vmem:[%s186 + $0x120] sm:$0xff] %v259
                %v261 = vld [vmem:[%s185 + $0x248] sm:$0xff]
                %262 = vst [vmem:[%s186 + $0x128] sm:$0xff] %v261
                %v263 = vld [vmem:[%s185 + $0x260] sm:$0xff]
                %264 = vst [vmem:[%s186 + $0x130] sm:$0xff] %v263
                %v265 = vld [vmem:[%s185 + $0x268] sm:$0xff]
                %266 = vst [vmem:[%s186 + $0x138] sm:$0xff] %v265
                %v267 = vld [vmem:[%s185 + $0x280] sm:$0xff]
                %268 = vst [vmem:[%s186 + $0x140] sm:$0xff] %v267
                %v269 = vld [vmem:[%s185 + $0x288] sm:$0xff]
                %270 = vst [vmem:[%s186 + $0x148] sm:$0xff] %v269
                %v271 = vld [vmem:[%s185 + $0x2a0] sm:$0xff]
                %272 = vst [vmem:[%s186 + $0x150] sm:$0xff] %v271
                %v273 = vld [vmem:[%s185 + $0x2a8] sm:$0xff]
                %274 = vst [vmem:[%s186 + $0x158] sm:$0xff] %v273
                %v275 = vld [vmem:[%s185 + $0x2c0] sm:$0xff]
                %276 = vst [vmem:[%s186 + $0x160] sm:$0xff] %v275
                %v277 = vld [vmem:[%s185 + $0x2c8] sm:$0xff]
                %278 = vst [vmem:[%s186 + $0x168] sm:$0xff] %v277
                %v279 = vld [vmem:[%s185 + $0x2e0] sm:$0xff]
                %280 = vst [vmem:[%s186 + $0x170] sm:$0xff] %v279
                %v281 = vld [vmem:[%s185 + $0x2e8] sm:$0xff]
                %282 = vst [vmem:[%s186 + $0x178] sm:$0xff] %v281
                %v283 = vld [vmem:[%s185 + $0x300] sm:$0xff]
                %284 = vst [vmem:[%s186 + $0x180] sm:$0xff] %v283
                %v285 = vld [vmem:[%s185 + $0x308] sm:$0xff]
                %286 = vst [vmem:[%s186 + $0x188] sm:$0xff] %v285
                %v287 = vld [vmem:[%s185 + $0x320] sm:$0xff]
                %288 = vst [vmem:[%s186 + $0x190] sm:$0xff] %v287
                %v289 = vld [vmem:[%s185 + $0x328] sm:$0xff]
                %290 = vst [vmem:[%s186 + $0x198] sm:$0xff] %v289
                %v291 = vld [vmem:[%s185 + $0x340] sm:$0xff]
                %292 = vst [vmem:[%s186 + $0x1a0] sm:$0xff] %v291
                %v293 = vld [vmem:[%s185 + $0x348] sm:$0xff]
                %294 = vst [vmem:[%s186 + $0x1a8] sm:$0xff] %v293
                %v295 = vld [vmem:[%s185 + $0x360] sm:$0xff]
                %296 = vst [vmem:[%s186 + $0x1b0] sm:$0xff] %v295
                %v297 = vld [vmem:[%s185 + $0x368] sm:$0xff]
                %298 = vst [vmem:[%s186 + $0x1b8] sm:$0xff] %v297
                %v299 = vld [vmem:[%s185 + $0x380] sm:$0xff]
                %300 = vst [vmem:[%s186 + $0x1c0] sm:$0xff] %v299
                %v301 = vld [vmem:[%s185 + $0x388] sm:$0xff]
                %302 = vst [vmem:[%s186 + $0x1c8] sm:$0xff] %v301
                %v303 = vld [vmem:[%s185 + $0x3a0] sm:$0xff]
                %304 = vst [vmem:[%s186 + $0x1d0] sm:$0xff] %v303
                %v305 = vld [vmem:[%s185 + $0x3a8] sm:$0xff]
                %306 = vst [vmem:[%s186 + $0x1d8] sm:$0xff] %v305
                %v307 = vld [vmem:[%s185 + $0x3c0] sm:$0xff]
                %308 = vst [vmem:[%s186 + $0x1e0] sm:$0xff] %v307
                %v309 = vld [vmem:[%s185 + $0x3c8] sm:$0xff]
                %310 = vst [vmem:[%s186 + $0x1e8] sm:$0xff] %v309
                %v311 = vld [vmem:[%s185 + $0x3e0] sm:$0xff]
                %312 = vst [vmem:[%s186 + $0x1f0] sm:$0xff] %v311
                %v313 = vld [vmem:[%s185 + $0x3e8] sm:$0xff]
                %314 = vst [vmem:[%s186 + $0x1f8] sm:$0xff] %v313
                %v315 = vld [vmem:[%s185 + $0x400] sm:$0xff]
                %316 = vst [vmem:[%s186 + $0x200] sm:$0xff] %v315
                %v317 = vld [vmem:[%s185 + $0x408] sm:$0xff]
                %318 = vst [vmem:[%s186 + $0x208] sm:$0xff] %v317
                %v319 = vld [vmem:[%s185 + $0x420] sm:$0xff]
                %320 = vst [vmem:[%s186 + $0x210] sm:$0xff] %v319
                %v321 = vld [vmem:[%s185 + $0x428] sm:$0xff]
                %322 = vst [vmem:[%s186 + $0x218] sm:$0xff] %v321
                %v323 = vld [vmem:[%s185 + $0x440] sm:$0xff]
                %324 = vst [vmem:[%s186 + $0x220] sm:$0xff] %v323
                %v325 = vld [vmem:[%s185 + $0x448] sm:$0xff]
                %326 = vst [vmem:[%s186 + $0x228] sm:$0xff] %v325
                %v327 = vld [vmem:[%s185 + $0x460] sm:$0xff]
                %328 = vst [vmem:[%s186 + $0x230] sm:$0xff] %v327
                %v329 = vld [vmem:[%s185 + $0x468] sm:$0xff]
                %330 = vst [vmem:[%s186 + $0x238] sm:$0xff] %v329
                %v331 = vld [vmem:[%s185 + $0x480] sm:$0xff]
                %332 = vst [vmem:[%s186 + $0x240] sm:$0xff] %v331
                %v333 = vld [vmem:[%s185 + $0x488] sm:$0xff]
                %334 = vst [vmem:[%s186 + $0x248] sm:$0xff] %v333
                %v335 = vld [vmem:[%s185 + $0x4a0] sm:$0xff]
                %336 = vst [vmem:[%s186 + $0x250] sm:$0xff] %v335
                %v337 = vld [vmem:[%s185 + $0x4a8] sm:$0xff]
                %338 = vst [vmem:[%s186 + $0x258] sm:$0xff] %v337
                %v339 = vld [vmem:[%s185 + $0x4c0] sm:$0xff]
                %340 = vst [vmem:[%s186 + $0x260] sm:$0xff] %v339
                %v341 = vld [vmem:[%s185 + $0x4c8] sm:$0xff]
                %342 = vst [vmem:[%s186 + $0x268] sm:$0xff] %v341
                %v343 = vld [vmem:[%s185 + $0x4e0] sm:$0xff]
                %344 = vst [vmem:[%s186 + $0x270] sm:$0xff] %v343
                %v345 = vld [vmem:[%s185 + $0x4e8] sm:$0xff]
                %346 = vst [vmem:[%s186 + $0x278] sm:$0xff] %v345
                %v347 = vld [vmem:[%s185 + $0x500] sm:$0xff]
                %348 = vst [vmem:[%s186 + $0x280] sm:$0xff] %v347
                %v349 = vld [vmem:[%s185 + $0x508] sm:$0xff]
                %350 = vst [vmem:[%s186 + $0x288] sm:$0xff] %v349
                %v351 = vld [vmem:[%s185 + $0x520] sm:$0xff]
                %352 = vst [vmem:[%s186 + $0x290] sm:$0xff] %v351
                %v353 = vld [vmem:[%s185 + $0x528] sm:$0xff]
                %354 = vst [vmem:[%s186 + $0x298] sm:$0xff] %v353
                %v355 = vld [vmem:[%s185 + $0x540] sm:$0xff]
                %356 = vst [vmem:[%s186 + $0x2a0] sm:$0xff] %v355
                %v357 = vld [vmem:[%s185 + $0x548] sm:$0xff]
                %358 = vst [vmem:[%s186 + $0x2a8] sm:$0xff] %v357
                %v359 = vld [vmem:[%s185 + $0x560] sm:$0xff]
                %360 = vst [vmem:[%s186 + $0x2b0] sm:$0xff] %v359
                %v361 = vld [vmem:[%s185 + $0x568] sm:$0xff]
                %362 = vst [vmem:[%s186 + $0x2b8] sm:$0xff] %v361
                %v363 = vld [vmem:[%s185 + $0x580] sm:$0xff]
                %364 = vst [vmem:[%s186 + $0x2c0] sm:$0xff] %v363
                %v365 = vld [vmem:[%s185 + $0x588] sm:$0xff]
                %366 = vst [vmem:[%s186 + $0x2c8] sm:$0xff] %v365
                %v367 = vld [vmem:[%s185 + $0x5a0] sm:$0xff]
                %368 = vst [vmem:[%s186 + $0x2d0] sm:$0xff] %v367
                %v369 = vld [vmem:[%s185 + $0x5a8] sm:$0xff]
                %370 = vst [vmem:[%s186 + $0x2d8] sm:$0xff] %v369
                %v371 = vld [vmem:[%s185 + $0x5c0] sm:$0xff]
                %372 = vst [vmem:[%s186 + $0x2e0] sm:$0xff] %v371
                %v373 = vld [vmem:[%s185 + $0x5c8] sm:$0xff]
                %374 = vst [vmem:[%s186 + $0x2e8] sm:$0xff] %v373
                %v375 = vld [vmem:[%s185 + $0x5e0] sm:$0xff]
                %376 = vst [vmem:[%s186 + $0x2f0] sm:$0xff] %v375
                %v377 = vld [vmem:[%s185 + $0x5e8] sm:$0xff]
                %378 = vst [vmem:[%s186 + $0x2f8] sm:$0xff] %v377
                %v379 = vld [vmem:[%s185 + $0x600] sm:$0xff]
                %380 = vst [vmem:[%s186 + $0x300] sm:$0xff] %v379
                %v381 = vld [vmem:[%s185 + $0x608] sm:$0xff]
                %382 = vst [vmem:[%s186 + $0x308] sm:$0xff] %v381
                %v383 = vld [vmem:[%s185 + $0x620] sm:$0xff]
                %384 = vst [vmem:[%s186 + $0x310] sm:$0xff] %v383
                %v385 = vld [vmem:[%s185 + $0x628] sm:$0xff]
                %386 = vst [vmem:[%s186 + $0x318] sm:$0xff] %v385
                %v387 = vld [vmem:[%s185 + $0x640] sm:$0xff]
                %388 = vst [vmem:[%s186 + $0x320] sm:$0xff] %v387
                %v389 = vld [vmem:[%s185 + $0x648] sm:$0xff]
                %390 = vst [vmem:[%s186 + $0x328] sm:$0xff] %v389
                %v391 = vld [vmem:[%s185 + $0x660] sm:$0xff]
                %392 = vst [vmem:[%s186 + $0x330] sm:$0xff] %v391
                %v393 = vld [vmem:[%s185 + $0x668] sm:$0xff]
                %394 = vst [vmem:[%s186 + $0x338] sm:$0xff] %v393
                %v395 = vld [vmem:[%s185 + $0x680] sm:$0xff]
                %396 = vst [vmem:[%s186 + $0x340] sm:$0xff] %v395
                %v397 = vld [vmem:[%s185 + $0x688] sm:$0xff]
                %398 = vst [vmem:[%s186 + $0x348] sm:$0xff] %v397
                %v399 = vld [vmem:[%s185 + $0x6a0] sm:$0xff]
                %400 = vst [vmem:[%s186 + $0x350] sm:$0xff] %v399
                %v401 = vld [vmem:[%s185 + $0x6a8] sm:$0xff]
                %402 = vst [vmem:[%s186 + $0x358] sm:$0xff] %v401
                %v403 = vld [vmem:[%s185 + $0x6c0] sm:$0xff]
                %404 = vst [vmem:[%s186 + $0x360] sm:$0xff] %v403
                %v405 = vld [vmem:[%s185 + $0x6c8] sm:$0xff]
                %406 = vst [vmem:[%s186 + $0x368] sm:$0xff] %v405
                %v407 = vld [vmem:[%s185 + $0x6e0] sm:$0xff]
                %408 = vst [vmem:[%s186 + $0x370] sm:$0xff] %v407
                %v409 = vld [vmem:[%s185 + $0x6e8] sm:$0xff]
                %410 = vst [vmem:[%s186 + $0x378] sm:$0xff] %v409
                %v411 = vld [vmem:[%s185 + $0x700] sm:$0xff]
                %412 = vst [vmem:[%s186 + $0x380] sm:$0xff] %v411
                %v413 = vld [vmem:[%s185 + $0x708] sm:$0xff]
                %414 = vst [vmem:[%s186 + $0x388] sm:$0xff] %v413
                %v415 = vld [vmem:[%s185 + $0x720] sm:$0xff]
                %416 = vst [vmem:[%s186 + $0x390] sm:$0xff] %v415
                %v417 = vld [vmem:[%s185 + $0x728] sm:$0xff]
                %418 = vst [vmem:[%s186 + $0x398] sm:$0xff] %v417
                %v419 = vld [vmem:[%s185 + $0x740] sm:$0xff]
                %420 = vst [vmem:[%s186 + $0x3a0] sm:$0xff] %v419
                %v421 = vld [vmem:[%s185 + $0x748] sm:$0xff]
                %422 = vst [vmem:[%s186 + $0x3a8] sm:$0xff] %v421
                %v423 = vld [vmem:[%s185 + $0x760] sm:$0xff]
                %424 = vst [vmem:[%s186 + $0x3b0] sm:$0xff] %v423
                %v425 = vld [vmem:[%s185 + $0x768] sm:$0xff]
                %426 = vst [vmem:[%s186 + $0x3b8] sm:$0xff] %v425
                %v427 = vld [vmem:[%s185 + $0x780] sm:$0xff]
                %428 = vst [vmem:[%s186 + $0x3c0] sm:$0xff] %v427
                %v429 = vld [vmem:[%s185 + $0x788] sm:$0xff]
                %430 = vst [vmem:[%s186 + $0x3c8] sm:$0xff] %v429
                %v431 = vld [vmem:[%s185 + $0x7a0] sm:$0xff]
                %432 = vst [vmem:[%s186 + $0x3d0] sm:$0xff] %v431
                %v433 = vld [vmem:[%s185 + $0x7a8] sm:$0xff]
                %434 = vst [vmem:[%s186 + $0x3d8] sm:$0xff] %v433
                %v435 = vld [vmem:[%s185 + $0x7c0] sm:$0xff]
                %436 = vst [vmem:[%s186 + $0x3e0] sm:$0xff] %v435
                %v437 = vld [vmem:[%s185 + $0x7c8] sm:$0xff]
                %438 = vst [vmem:[%s186 + $0x3e8] sm:$0xff] %v437
                %v439 = vld [vmem:[%s185 + $0x7e0] sm:$0xff]
                %440 = vst [vmem:[%s186 + $0x3f0] sm:$0xff] %v439
                %v441 = vld [vmem:[%s185 + $0x7e8] sm:$0xff]
                %442 = vst [vmem:[%s186 + $0x3f8] sm:$0xff] %v441
              $region41: #{dummy_gcn3_forward.2} parent=35 // loop_footer
                %s184 = sadd.s32 1, %s180
              $region42: #{dummy_gcn3_forward.2} parent=35 // loop_footer_branch
                %179 = sbr.rel target = $region38
              $region43: #{dummy_gcn3_forward.2} parent=35 // loop_exit
                _
            $region36: #{dummy_gcn3_forward.2} parent=31 // pred_fallthru
              _
            // Predicated region
            $region44: #{dummy_gcn3_forward.2} parent=31 // pred_check
              _
            $region45: #{dummy_gcn3_forward.2} parent=31 // pred_check_branch
              %444 = sbr.rel target = $region47
            $region46: #{dummy_gcn3_forward.2} parent=31 // pred_region
              _
            $region47: #{dummy_gcn3_forward.2} parent=31 // pred_fallthru
              _
          $region32: #{dummy_gcn3_forward.2} parent=27 // pred_fallthru
            _
          %445 = vnop
        $region28: #{dummy_gcn3_forward.2} parent=19 // pred_fallthru
          _
      $region20: #{dummy_gcn3_forward.2} parent=5 // pred_fallthru
        _
      %p446 = scmp.le.s32.totalorder 1, %s10
      %p447 = scmp.lt.s32.totalorder %s10, 5
      %p448 = pnand %p446, %p447
      %p449 = pneg %p448
      // Predicated region
      $region48: #{dummy_gcn3_forward.2} parent=5 // pred_check
        _
      $region49: #{dummy_gcn3_forward.2} parent=5 // pred_check_branch
        %451 = sbr.rel (%p448) target = $region51
      $region50: #{dummy_gcn3_forward.2} parent=5 // pred_region
        %s452 = ssub.s32 %s10, 1
        // Predicated region
        $region52: #{dummy_gcn3_forward.2} parent=50 // pred_check
          %p453 = pneg %p43
        $region53: #{dummy_gcn3_forward.2} parent=50 // pred_check_branch
          %455 = sbr.rel (%p453) target = $region55
        $region54: #{dummy_gcn3_forward.2} parent=50 // pred_region
          %456 = dma.done [#allocation4], 64
        $region55: #{dummy_gcn3_forward.2} parent=50 // pred_fallthru
          _
        %s457 = sand.u32 %s84, 1
        %s458 = sand.u32 %s84, 1
        %s459 = smul.addr %s458, 1024
        %s460 = scalar_lea.vmem [#allocation5], %s459
        // Predicated region
        $region56: #{dummy_gcn3_forward.2} parent=50 // pred_check
          %p461 = pneg %p97
        $region57: #{dummy_gcn3_forward.2} parent=50 // pred_check_branch
          %463 = sbr.rel (%p461) target = $region59
        $region58: #{dummy_gcn3_forward.2} parent=50 // pred_region
          _
        $region59: #{dummy_gcn3_forward.2} parent=50 // pred_fallthru
          _
        %464 = sfence
        %p465 = pneg %p43
        %p466 = pneg %p40
        %s467 = smul.u32 4, %s20
        %p468 = scmp.lt.s32.totalorder %s467, 7
        %s469 = scalar_select %p468, %s467, 7
        %s470 = smul.addr %s469, 4
        %s471 = scalar_lea.vmem %s1, %s470
        %p472 = pneg %p69
        %p473 = pneg %p66
        %s474 = sand.u32 %s84, 1
        %s475 = sand.u32 %s84, 1
        %s476 = smul.addr %s475, 1024
        %s477 = scalar_lea.vmem [#allocation5], %s476
        %p478 = pneg %p97
        %p479 = pneg %p94
        %p480 = pneg %p123
        %p481 = pneg %p120
        %s482 = smul.u32 4, %s19
        %p483 = scmp.lt.s32.totalorder %s482, 7
        %s484 = scalar_select %p483, %s482, 7
        %s485 = smul.addr %s484, 8
        %s486 = scalar_lea.vmem %s3, %s485
        %s487 = smul.u32 4, %s20
        %p488 = scmp.lt.s32.totalorder %s487, 7
        %s489 = scalar_select %p488, %s487, 7
        %s490 = smul.addr %s489, 4
        %s491 = scalar_lea.vmem %s1, %s490
        %s492 = smul.u32 4, %s20
        %s493 = smul.u32 64, %s20
        %s494 = smul.u32 4, %s19
        %s495 = smul.u32 4, %s19
        %p496 = scmp.lt.s32.totalorder %s495, 7
        %s497 = scalar_select %p496, %s495, 7
        %s498 = smul.addr %s497, 8
        %s499 = scalar_lea.vmem %s3, %s498
        %s500 = smul.u32 4, %s19
        %p501 = scmp.eq.s32.totalorder %s20, 0
        // Predicated region
        $region60: #{dummy_gcn3_forward.2} parent=50 // pred_check
          %p502 = pneg %p501
        $region61: #{dummy_gcn3_forward.2} parent=50 // pred_check_branch
          %504 = sbr.rel (%p502) target = $region63
        $region62: #{dummy_gcn3_forward.2} parent=50 // pred_region
          %505 = vst [vmem:[#allocation2] sm:$0xff] 0.0
          %506 = vst [vmem:[#allocation2 + $0x8] sm:$0xff] 0.0
          %507 = vst [vmem:[#allocation2 + $0x10] sm:$0xff] 0.0
          %508 = vst [vmem:[#allocation2 + $0x18] sm:$0xff] 0.0
        $region63: #{dummy_gcn3_forward.2} parent=50 // pred_fallthru
          _
        %v509 = vld [vmem:[#allocation2] sm:$0xff]
        %v510 = vld [vmem:[#allocation2 + $0x8] sm:$0xff]
        %v511 = vld [vmem:[#allocation2 + $0x10] sm:$0xff]
        %v512 = vld [vmem:[#allocation2 + $0x18] sm:$0xff]
        %v513 = vld [vmem:[%s491] sm:$0xff]
        %v514 = vld [vmem:[%s491 + $0x8] sm:$0xff]
        %v515 = vld [vmem:[%s460] sm:$0xff]
        %v516 = vld [vmem:[%s460 + $0x8] sm:$0xff]
        %v517 = vld [vmem:[%s460 + $0x10] sm:$0xff]
        %v518 = vld [vmem:[%s460 + $0x18] sm:$0xff]
        %v519 = vld [vmem:[%s460 + $0x20] sm:$0xff]
        %v520 = vld [vmem:[%s460 + $0x28] sm:$0xff]
        %v521 = vld [vmem:[%s460 + $0x30] sm:$0xff]
        %v522 = vld [vmem:[%s460 + $0x38] sm:$0xff]
        %v523 = vld [vmem:[%s460 + $0x40] sm:$0xff]
        %v524 = vld [vmem:[%s460 + $0x48] sm:$0xff]
        %v525 = vld [vmem:[%s460 + $0x50] sm:$0xff]
        %v526 = vld [vmem:[%s460 + $0x58] sm:$0xff]
        %v527 = vld [vmem:[%s460 + $0x60] sm:$0xff]
        %v528 = vld [vmem:[%s460 + $0x68] sm:$0xff]
        %v529 = vld [vmem:[%s460 + $0x70] sm:$0xff]
        %v530 = vld [vmem:[%s460 + $0x78] sm:$0xff]
        %v531 = vld [vmem:[%s460 + $0x80] sm:$0xff]
        %v532 = vld [vmem:[%s460 + $0x88] sm:$0xff]
        %v533 = vld [vmem:[%s460 + $0x90] sm:$0xff]
        %v534 = vld [vmem:[%s460 + $0x98] sm:$0xff]
        %v535 = vld [vmem:[%s460 + $0xa0] sm:$0xff]
        %v536 = vld [vmem:[%s460 + $0xa8] sm:$0xff]
        %v537 = vld [vmem:[%s460 + $0xb0] sm:$0xff]
        %v538 = vld [vmem:[%s460 + $0xb8] sm:$0xff]
        %v539 = vld [vmem:[%s460 + $0xc0] sm:$0xff]
        %v540 = vld [vmem:[%s460 + $0xc8] sm:$0xff]
        %v541 = vld [vmem:[%s460 + $0xd0] sm:$0xff]
        %v542 = vld [vmem:[%s460 + $0xd8] sm:$0xff]
        %v543 = vld [vmem:[%s460 + $0xe0] sm:$0xff]
        %v544 = vld [vmem:[%s460 + $0xe8] sm:$0xff]
        %v545 = vld [vmem:[%s460 + $0xf0] sm:$0xff]
        %v546 = vld [vmem:[%s460 + $0xf8] sm:$0xff]
        %v547 = vld [vmem:[%s460 + $0x100] sm:$0xff]
        %v548 = vld [vmem:[%s460 + $0x108] sm:$0xff]
        %v549 = vld [vmem:[%s460 + $0x110] sm:$0xff]
        %v550 = vld [vmem:[%s460 + $0x118] sm:$0xff]
        %v551 = vld [vmem:[%s460 + $0x120] sm:$0xff]
        %v552 = vld [vmem:[%s460 + $0x128] sm:$0xff]
        %v553 = vld [vmem:[%s460 + $0x130] sm:$0xff]
        %v554 = vld [vmem:[%s460 + $0x138] sm:$0xff]
        %v555 = vld [vmem:[%s460 + $0x140] sm:$0xff]
        %v556 = vld [vmem:[%s460 + $0x148] sm:$0xff]
        %v557 = vld [vmem:[%s460 + $0x150] sm:$0xff]
        %v558 = vld [vmem:[%s460 + $0x158] sm:$0xff]
        %v559 = vld [vmem:[%s460 + $0x160] sm:$0xff]
        %v560 = vld [vmem:[%s460 + $0x168] sm:$0xff]
        %v561 = vld [vmem:[%s460 + $0x170] sm:$0xff]
        %v562 = vld [vmem:[%s460 + $0x178] sm:$0xff]
        %v563 = vld [vmem:[%s460 + $0x180] sm:$0xff]
        %v564 = vld [vmem:[%s460 + $0x188] sm:$0xff]
        %v565 = vld [vmem:[%s460 + $0x190] sm:$0xff]
        %v566 = vld [vmem:[%s460 + $0x198] sm:$0xff]
        %v567 = vld [vmem:[%s460 + $0x1a0] sm:$0xff]
        %v568 = vld [vmem:[%s460 + $0x1a8] sm:$0xff]
        %v569 = vld [vmem:[%s460 + $0x1b0] sm:$0xff]
        %v570 = vld [vmem:[%s460 + $0x1b8] sm:$0xff]
        %v571 = vld [vmem:[%s460 + $0x1c0] sm:$0xff]
        %v572 = vld [vmem:[%s460 + $0x1c8] sm:$0xff]
        %v573 = vld [vmem:[%s460 + $0x1d0] sm:$0xff]
        %v574 = vld [vmem:[%s460 + $0x1d8] sm:$0xff]
        %v575 = vld [vmem:[%s460 + $0x1e0] sm:$0xff]
        %v576 = vld [vmem:[%s460 + $0x1e8] sm:$0xff]
        %v577 = vld [vmem:[%s460 + $0x1f0] sm:$0xff]
        %v578 = vld [vmem:[%s460 + $0x1f8] sm:$0xff]
        %v579 = vld [vmem:[%s460 + $0x200] sm:$0xff]
        %v580 = vld [vmem:[%s460 + $0x208] sm:$0xff]
        %v581 = vld [vmem:[%s460 + $0x210] sm:$0xff]
        %v582 = vld [vmem:[%s460 + $0x218] sm:$0xff]
        %v583 = vld [vmem:[%s460 + $0x220] sm:$0xff]
        %v584 = vld [vmem:[%s460 + $0x228] sm:$0xff]
        %v585 = vld [vmem:[%s460 + $0x230] sm:$0xff]
        %v586 = vld [vmem:[%s460 + $0x238] sm:$0xff]
        %v587 = vld [vmem:[%s460 + $0x240] sm:$0xff]
        %v588 = vld [vmem:[%s460 + $0x248] sm:$0xff]
        %v589 = vld [vmem:[%s460 + $0x250] sm:$0xff]
        %v590 = vld [vmem:[%s460 + $0x258] sm:$0xff]
        %v591 = vld [vmem:[%s460 + $0x260] sm:$0xff]
        %v592 = vld [vmem:[%s460 + $0x268] sm:$0xff]
        %v593 = vld [vmem:[%s460 + $0x270] sm:$0xff]
        %v594 = vld [vmem:[%s460 + $0x278] sm:$0xff]
        %v595 = vld [vmem:[%s460 + $0x280] sm:$0xff]
        %v596 = vld [vmem:[%s460 + $0x288] sm:$0xff]
        %v597 = vld [vmem:[%s460 + $0x290] sm:$0xff]
        %v598 = vld [vmem:[%s460 + $0x298] sm:$0xff]
        %v599 = vld [vmem:[%s460 + $0x2a0] sm:$0xff]
        %v600 = vld [vmem:[%s460 + $0x2a8] sm:$0xff]
        %v601 = vld [vmem:[%s460 + $0x2b0] sm:$0xff]
        %v602 = vld [vmem:[%s460 + $0x2b8] sm:$0xff]
        %v603 = vld [vmem:[%s460 + $0x2c0] sm:$0xff]
        %v604 = vld [vmem:[%s460 + $0x2c8] sm:$0xff]
        %v605 = vld [vmem:[%s460 + $0x2d0] sm:$0xff]
        %v606 = vld [vmem:[%s460 + $0x2d8] sm:$0xff]
        %v607 = vld [vmem:[%s460 + $0x2e0] sm:$0xff]
        %v608 = vld [vmem:[%s460 + $0x2e8] sm:$0xff]
        %v609 = vld [vmem:[%s460 + $0x2f0] sm:$0xff]
        %v610 = vld [vmem:[%s460 + $0x2f8] sm:$0xff]
        %v611 = vld [vmem:[%s460 + $0x300] sm:$0xff]
        %v612 = vld [vmem:[%s460 + $0x308] sm:$0xff]
        %v613 = vld [vmem:[%s460 + $0x310] sm:$0xff]
        %v614 = vld [vmem:[%s460 + $0x318] sm:$0xff]
        %v615 = vld [vmem:[%s460 + $0x320] sm:$0xff]
        %v616 = vld [vmem:[%s460 + $0x328] sm:$0xff]
        %v617 = vld [vmem:[%s460 + $0x330] sm:$0xff]
        %v618 = vld [vmem:[%s460 + $0x338] sm:$0xff]
        %v619 = vld [vmem:[%s460 + $0x340] sm:$0xff]
        %v620 = vld [vmem:[%s460 + $0x348] sm:$0xff]
        %v621 = vld [vmem:[%s460 + $0x350] sm:$0xff]
        %v622 = vld [vmem:[%s460 + $0x358] sm:$0xff]
        %v623 = vld [vmem:[%s460 + $0x360] sm:$0xff]
        %v624 = vld [vmem:[%s460 + $0x368] sm:$0xff]
        %v625 = vld [vmem:[%s460 + $0x370] sm:$0xff]
        %v626 = vld [vmem:[%s460 + $0x378] sm:$0xff]
        %v627 = vld [vmem:[%s460 + $0x380] sm:$0xff]
        %v628 = vld [vmem:[%s460 + $0x388] sm:$0xff]
        %v629 = vld [vmem:[%s460 + $0x390] sm:$0xff]
        %v630 = vld [vmem:[%s460 + $0x398] sm:$0xff]
        %v631 = vld [vmem:[%s460 + $0x3a0] sm:$0xff]
        %v632 = vld [vmem:[%s460 + $0x3a8] sm:$0xff]
        %v633 = vld [vmem:[%s460 + $0x3b0] sm:$0xff]
        %v634 = vld [vmem:[%s460 + $0x3b8] sm:$0xff]
        %v635 = vld [vmem:[%s460 + $0x3c0] sm:$0xff]
        %v636 = vld [vmem:[%s460 + $0x3c8] sm:$0xff]
        %v637 = vld [vmem:[%s460 + $0x3d0] sm:$0xff]
        %v638 = vld [vmem:[%s460 + $0x3d8] sm:$0xff]
        %v639 = vld [vmem:[%s460 + $0x3e0] sm:$0xff]
        %v640 = vld [vmem:[%s460 + $0x3e8] sm:$0xff]
        %v641 = vld [vmem:[%s460 + $0x3f0] sm:$0xff]
        %v642 = vld [vmem:[%s460 + $0x3f8] sm:$0xff]
        %v645 = vunpack.c.l.b16 %v513
        %v646 = vunpack.c.h.b16 %v513
        %v647 = vunpack.c.l.b16 %v514
        %v648 = vunpack.c.h.b16 %v514
        %v649 = vpack.c.b16 %v645, %v645
        %v650 = vpack.c.b16 %v646, %v646
        %v651 = vpack.c.b16 %v647, %v647
        %v652 = vpack.c.b16 %v648, %v648
        %v785 = vunpack.c.l.b16 %v515
        %v786 = vunpack.c.h.b16 %v515
        %v787 = vunpack.c.l.b16 %v516
        %v788 = vunpack.c.h.b16 %v516
        %v789 = vunpack.c.l.b16 %v517
        %v790 = vunpack.c.h.b16 %v517
        %v791 = vunpack.c.l.b16 %v518
        %v792 = vunpack.c.h.b16 %v518
        %v793 = vunpack.c.l.b16 %v519
        %v794 = vunpack.c.h.b16 %v519
        %v795 = vunpack.c.l.b16 %v520
        %v796 = vunpack.c.h.b16 %v520
        %v797 = vunpack.c.l.b16 %v521
        %v798 = vunpack.c.h.b16 %v521
        %v799 = vunpack.c.l.b16 %v522
        %v800 = vunpack.c.h.b16 %v522
        %v801 = vunpack.c.l.b16 %v523
        %v802 = vunpack.c.h.b16 %v523
        %v803 = vunpack.c.l.b16 %v524
        %v804 = vunpack.c.h.b16 %v524
        %v805 = vunpack.c.l.b16 %v525
        %v806 = vunpack.c.h.b16 %v525
        %v807 = vunpack.c.l.b16 %v526
        %v808 = vunpack.c.h.b16 %v526
        %v809 = vunpack.c.l.b16 %v527
        %v810 = vunpack.c.h.b16 %v527
        %v811 = vunpack.c.l.b16 %v528
        %v812 = vunpack.c.h.b16 %v528
        %v813 = vunpack.c.l.b16 %v529
        %v814 = vunpack.c.h.b16 %v529
        %v815 = vunpack.c.l.b16 %v530
        %v816 = vunpack.c.h.b16 %v530
        %v817 = vunpack.c.l.b16 %v531
        %v818 = vunpack.c.h.b16 %v531
        %v819 = vunpack.c.l.b16 %v532
        %v820 = vunpack.c.h.b16 %v532
        %v821 = vunpack.c.l.b16 %v533
        %v822 = vunpack.c.h.b16 %v533
        %v823 = vunpack.c.l.b16 %v534
        %v824 = vunpack.c.h.b16 %v534
        %v825 = vunpack.c.l.b16 %v535
        %v826 = vunpack.c.h.b16 %v535
        %v827 = vunpack.c.l.b16 %v536
        %v828 = vunpack.c.h.b16 %v536
        %v829 = vunpack.c.l.b16 %v537
        %v830 = vunpack.c.h.b16 %v537
        %v831 = vunpack.c.l.b16 %v538
        %v832 = vunpack.c.h.b16 %v538
        %v833 = vunpack.c.l.b16 %v539
        %v834 = vunpack.c.h.b16 %v539
        %v835 = vunpack.c.l.b16 %v540
        %v836 = vunpack.c.h.b16 %v540
        %v837 = vunpack.c.l.b16 %v541
        %v838 = vunpack.c.h.b16 %v541
        %v839 = vunpack.c.l.b16 %v542
        %v840 = vunpack.c.h.b16 %v542
        %v841 = vunpack.c.l.b16 %v543
        %v842 = vunpack.c.h.b16 %v543
        %v843 = vunpack.c.l.b16 %v544
        %v844 = vunpack.c.h.b16 %v544
        %v845 = vunpack.c.l.b16 %v545
        %v846 = vunpack.c.h.b16 %v545
        %v847 = vunpack.c.l.b16 %v546
        %v848 = vunpack.c.h.b16 %v546
        %v849 = vunpack.c.l.b16 %v547
        %v850 = vunpack.c.h.b16 %v547
        %v851 = vunpack.c.l.b16 %v548
        %v852 = vunpack.c.h.b16 %v548
        %v853 = vunpack.c.l.b16 %v549
        %v854 = vunpack.c.h.b16 %v549
        %v855 = vunpack.c.l.b16 %v550
        %v856 = vunpack.c.h.b16 %v550
        %v857 = vunpack.c.l.b16 %v551
        %v858 = vunpack.c.h.b16 %v551
        %v859 = vunpack.c.l.b16 %v552
        %v860 = vunpack.c.h.b16 %v552
        %v861 = vunpack.c.l.b16 %v553
        %v862 = vunpack.c.h.b16 %v553
        %v863 = vunpack.c.l.b16 %v554
        %v864 = vunpack.c.h.b16 %v554
        %v865 = vunpack.c.l.b16 %v555
        %v866 = vunpack.c.h.b16 %v555
        %v867 = vunpack.c.l.b16 %v556
        %v868 = vunpack.c.h.b16 %v556
        %v869 = vunpack.c.l.b16 %v557
        %v870 = vunpack.c.h.b16 %v557
        %v871 = vunpack.c.l.b16 %v558
        %v872 = vunpack.c.h.b16 %v558
        %v873 = vunpack.c.l.b16 %v559
        %v874 = vunpack.c.h.b16 %v559
        %v875 = vunpack.c.l.b16 %v560
        %v876 = vunpack.c.h.b16 %v560
        %v877 = vunpack.c.l.b16 %v561
        %v878 = vunpack.c.h.b16 %v561
        %v879 = vunpack.c.l.b16 %v562
        %v880 = vunpack.c.h.b16 %v562
        %v881 = vunpack.c.l.b16 %v563
        %v882 = vunpack.c.h.b16 %v563
        %v883 = vunpack.c.l.b16 %v564
        %v884 = vunpack.c.h.b16 %v564
        %v885 = vunpack.c.l.b16 %v565
        %v886 = vunpack.c.h.b16 %v565
        %v887 = vunpack.c.l.b16 %v566
        %v888 = vunpack.c.h.b16 %v566
        %v889 = vunpack.c.l.b16 %v567
        %v890 = vunpack.c.h.b16 %v567
        %v891 = vunpack.c.l.b16 %v568
        %v892 = vunpack.c.h.b16 %v568
        %v893 = vunpack.c.l.b16 %v569
        %v894 = vunpack.c.h.b16 %v569
        %v895 = vunpack.c.l.b16 %v570
        %v896 = vunpack.c.h.b16 %v570
        %v897 = vunpack.c.l.b16 %v571
        %v898 = vunpack.c.h.b16 %v571
        %v899 = vunpack.c.l.b16 %v572
        %v900 = vunpack.c.h.b16 %v572
        %v901 = vunpack.c.l.b16 %v573
        %v902 = vunpack.c.h.b16 %v573
        %v903 = vunpack.c.l.b16 %v574
        %v904 = vunpack.c.h.b16 %v574
        %v905 = vunpack.c.l.b16 %v575
        %v906 = vunpack.c.h.b16 %v575
        %v907 = vunpack.c.l.b16 %v576
        %v908 = vunpack.c.h.b16 %v576
        %v909 = vunpack.c.l.b16 %v577
        %v910 = vunpack.c.h.b16 %v577
        %v911 = vunpack.c.l.b16 %v578
        %v912 = vunpack.c.h.b16 %v578
        %v913 = vunpack.c.l.b16 %v579
        %v914 = vunpack.c.h.b16 %v579
        %v915 = vunpack.c.l.b16 %v580
        %v916 = vunpack.c.h.b16 %v580
        %v917 = vunpack.c.l.b16 %v581
        %v918 = vunpack.c.h.b16 %v581
        %v919 = vunpack.c.l.b16 %v582
        %v920 = vunpack.c.h.b16 %v582
        %v921 = vunpack.c.l.b16 %v583
        %v922 = vunpack.c.h.b16 %v583
        %v923 = vunpack.c.l.b16 %v584
        %v924 = vunpack.c.h.b16 %v584
        %v925 = vunpack.c.l.b16 %v585
        %v926 = vunpack.c.h.b16 %v585
        %v927 = vunpack.c.l.b16 %v586
        %v928 = vunpack.c.h.b16 %v586
        %v929 = vunpack.c.l.b16 %v587
        %v930 = vunpack.c.h.b16 %v587
        %v931 = vunpack.c.l.b16 %v588
        %v932 = vunpack.c.h.b16 %v588
        %v933 = vunpack.c.l.b16 %v589
        %v934 = vunpack.c.h.b16 %v589
        %v935 = vunpack.c.l.b16 %v590
        %v936 = vunpack.c.h.b16 %v590
        %v937 = vunpack.c.l.b16 %v591
        %v938 = vunpack.c.h.b16 %v591
        %v939 = vunpack.c.l.b16 %v592
        %v940 = vunpack.c.h.b16 %v592
        %v941 = vunpack.c.l.b16 %v593
        %v942 = vunpack.c.h.b16 %v593
        %v943 = vunpack.c.l.b16 %v594
        %v944 = vunpack.c.h.b16 %v594
        %v945 = vunpack.c.l.b16 %v595
        %v946 = vunpack.c.h.b16 %v595
        %v947 = vunpack.c.l.b16 %v596
        %v948 = vunpack.c.h.b16 %v596
        %v949 = vunpack.c.l.b16 %v597
        %v950 = vunpack.c.h.b16 %v597
        %v951 = vunpack.c.l.b16 %v598
        %v952 = vunpack.c.h.b16 %v598
        %v953 = vunpack.c.l.b16 %v599
        %v954 = vunpack.c.h.b16 %v599
        %v955 = vunpack.c.l.b16 %v600
        %v956 = vunpack.c.h.b16 %v600
        %v957 = vunpack.c.l.b16 %v601
        %v958 = vunpack.c.h.b16 %v601
        %v959 = vunpack.c.l.b16 %v602
        %v960 = vunpack.c.h.b16 %v602
        %v961 = vunpack.c.l.b16 %v603
        %v962 = vunpack.c.h.b16 %v603
        %v963 = vunpack.c.l.b16 %v604
        %v964 = vunpack.c.h.b16 %v604
        %v965 = vunpack.c.l.b16 %v605
        %v966 = vunpack.c.h.b16 %v605
        %v967 = vunpack.c.l.b16 %v606
        %v968 = vunpack.c.h.b16 %v606
        %v969 = vunpack.c.l.b16 %v607
        %v970 = vunpack.c.h.b16 %v607
        %v971 = vunpack.c.l.b16 %v608
        %v972 = vunpack.c.h.b16 %v608
        %v973 = vunpack.c.l.b16 %v609
        %v974 = vunpack.c.h.b16 %v609
        %v975 = vunpack.c.l.b16 %v610
        %v976 = vunpack.c.h.b16 %v610
        %v977 = vunpack.c.l.b16 %v611
        %v978 = vunpack.c.h.b16 %v611
        %v979 = vunpack.c.l.b16 %v612
        %v980 = vunpack.c.h.b16 %v612
        %v981 = vunpack.c.l.b16 %v613
        %v982 = vunpack.c.h.b16 %v613
        %v983 = vunpack.c.l.b16 %v614
        %v984 = vunpack.c.h.b16 %v614
        %v985 = vunpack.c.l.b16 %v615
        %v986 = vunpack.c.h.b16 %v615
        %v987 = vunpack.c.l.b16 %v616
        %v988 = vunpack.c.h.b16 %v616
        %v989 = vunpack.c.l.b16 %v617
        %v990 = vunpack.c.h.b16 %v617
        %v991 = vunpack.c.l.b16 %v618
        %v992 = vunpack.c.h.b16 %v618
        %v993 = vunpack.c.l.b16 %v619
        %v994 = vunpack.c.h.b16 %v619
        %v995 = vunpack.c.l.b16 %v620
        %v996 = vunpack.c.h.b16 %v620
        %v997 = vunpack.c.l.b16 %v621
        %v998 = vunpack.c.h.b16 %v621
        %v999 = vunpack.c.l.b16 %v622
        %v1000 = vunpack.c.h.b16 %v622
        %v1001 = vunpack.c.l.b16 %v623
        %v1002 = vunpack.c.h.b16 %v623
        %v1003 = vunpack.c.l.b16 %v624
        %v1004 = vunpack.c.h.b16 %v624
        %v1005 = vunpack.c.l.b16 %v625
        %v1006 = vunpack.c.h.b16 %v625
        %v1007 = vunpack.c.l.b16 %v626
        %v1008 = vunpack.c.h.b16 %v626
        %v1009 = vunpack.c.l.b16 %v627
        %v1010 = vunpack.c.h.b16 %v627
        %v1011 = vunpack.c.l.b16 %v628
        %v1012 = vunpack.c.h.b16 %v628
        %v1013 = vunpack.c.l.b16 %v629
        %v1014 = vunpack.c.h.b16 %v629
        %v1015 = vunpack.c.l.b16 %v630
        %v1016 = vunpack.c.h.b16 %v630
        %v1017 = vunpack.c.l.b16 %v631
        %v1018 = vunpack.c.h.b16 %v631
        %v1019 = vunpack.c.l.b16 %v632
        %v1020 = vunpack.c.h.b16 %v632
        %v1021 = vunpack.c.l.b16 %v633
        %v1022 = vunpack.c.h.b16 %v633
        %v1023 = vunpack.c.l.b16 %v634
        %v1024 = vunpack.c.h.b16 %v634
        %v1025 = vunpack.c.l.b16 %v635
        %v1026 = vunpack.c.h.b16 %v635
        %v1027 = vunpack.c.l.b16 %v636
        %v1028 = vunpack.c.h.b16 %v636
        %v1029 = vunpack.c.l.b16 %v637
        %v1030 = vunpack.c.h.b16 %v637
        %v1031 = vunpack.c.l.b16 %v638
        %v1032 = vunpack.c.h.b16 %v638
        %v1033 = vunpack.c.l.b16 %v639
        %v1034 = vunpack.c.h.b16 %v639
        %v1035 = vunpack.c.l.b16 %v640
        %v1036 = vunpack.c.h.b16 %v640
        %v1037 = vunpack.c.l.b16 %v641
        %v1038 = vunpack.c.h.b16 %v641
        %v1039 = vunpack.c.l.b16 %v642
        %v1040 = vunpack.c.h.b16 %v642
        %v1041 = vpack.c.b16 %v789, %v785
        %v1042 = vpack.c.b16 %v790, %v786
        %v1043 = vpack.c.b16 %v791, %v787
        %v1044 = vpack.c.b16 %v792, %v788
        %v1045 = vpack.c.b16 %v797, %v793
        %v1046 = vpack.c.b16 %v798, %v794
        %v1047 = vpack.c.b16 %v799, %v795
        %v1048 = vpack.c.b16 %v800, %v796
        %v1049 = vpack.c.b16 %v805, %v801
        %v1050 = vpack.c.b16 %v806, %v802
        %v1051 = vpack.c.b16 %v807, %v803
        %v1052 = vpack.c.b16 %v808, %v804
        %v1053 = vpack.c.b16 %v813, %v809
        %v1054 = vpack.c.b16 %v814, %v810
        %v1055 = vpack.c.b16 %v815, %v811
        %v1056 = vpack.c.b16 %v816, %v812
        %v1057 = vpack.c.b16 %v821, %v817
        %v1058 = vpack.c.b16 %v822, %v818
        %v1059 = vpack.c.b16 %v823, %v819
        %v1060 = vpack.c.b16 %v824, %v820
        %v1061 = vpack.c.b16 %v829, %v825
        %v1062 = vpack.c.b16 %v830, %v826
        %v1063 = vpack.c.b16 %v831, %v827
        %v1064 = vpack.c.b16 %v832, %v828
        %v1065 = vpack.c.b16 %v837, %v833
        %v1066 = vpack.c.b16 %v838, %v834
        %v1067 = vpack.c.b16 %v839, %v835
        %v1068 = vpack.c.b16 %v840, %v836
        %v1069 = vpack.c.b16 %v845, %v841
        %v1070 = vpack.c.b16 %v846, %v842
        %v1071 = vpack.c.b16 %v847, %v843
        %v1072 = vpack.c.b16 %v848, %v844
        %v1073 = vpack.c.b16 %v853, %v849
        %v1074 = vpack.c.b16 %v854, %v850
        %v1075 = vpack.c.b16 %v855, %v851
        %v1076 = vpack.c.b16 %v856, %v852
        %v1077 = vpack.c.b16 %v861, %v857
        %v1078 = vpack.c.b16 %v862, %v858
        %v1079 = vpack.c.b16 %v863, %v859
        %v1080 = vpack.c.b16 %v864, %v860
        %v1081 = vpack.c.b16 %v869, %v865
        %v1082 = vpack.c.b16 %v870, %v866
        %v1083 = vpack.c.b16 %v871, %v867
        %v1084 = vpack.c.b16 %v872, %v868
        %v1085 = vpack.c.b16 %v877, %v873
        %v1086 = vpack.c.b16 %v878, %v874
        %v1087 = vpack.c.b16 %v879, %v875
        %v1088 = vpack.c.b16 %v880, %v876
        %v1089 = vpack.c.b16 %v885, %v881
        %v1090 = vpack.c.b16 %v886, %v882
        %v1091 = vpack.c.b16 %v887, %v883
        %v1092 = vpack.c.b16 %v888, %v884
        %v1093 = vpack.c.b16 %v893, %v889
        %v1094 = vpack.c.b16 %v894, %v890
        %v1095 = vpack.c.b16 %v895, %v891
        %v1096 = vpack.c.b16 %v896, %v892
        %v1097 = vpack.c.b16 %v901, %v897
        %v1098 = vpack.c.b16 %v902, %v898
        %v1099 = vpack.c.b16 %v903, %v899
        %v1100 = vpack.c.b16 %v904, %v900
        %v1101 = vpack.c.b16 %v909, %v905
        %v1102 = vpack.c.b16 %v910, %v906
        %v1103 = vpack.c.b16 %v911, %v907
        %v1104 = vpack.c.b16 %v912, %v908
        %v1105 = vpack.c.b16 %v917, %v913
        %v1106 = vpack.c.b16 %v918, %v914
        %v1107 = vpack.c.b16 %v919, %v915
        %v1108 = vpack.c.b16 %v920, %v916
        %v1109 = vpack.c.b16 %v925, %v921
        %v1110 = vpack.c.b16 %v926, %v922
        %v1111 = vpack.c.b16 %v927, %v923
        %v1112 = vpack.c.b16 %v928, %v924
        %v1113 = vpack.c.b16 %v933, %v929
        %v1114 = vpack.c.b16 %v934, %v930
        %v1115 = vpack.c.b16 %v935, %v931
        %v1116 = vpack.c.b16 %v936, %v932
        %v1117 = vpack.c.b16 %v941, %v937
        %v1118 = vpack.c.b16 %v942, %v938
        %v1119 = vpack.c.b16 %v943, %v939
        %v1120 = vpack.c.b16 %v944, %v940
        %v1121 = vpack.c.b16 %v949, %v945
        %v1122 = vpack.c.b16 %v950, %v946
        %v1123 = vpack.c.b16 %v951, %v947
        %v1124 = vpack.c.b16 %v952, %v948
        %v1125 = vpack.c.b16 %v957, %v953
        %v1126 = vpack.c.b16 %v958, %v954
        %v1127 = vpack.c.b16 %v959, %v955
        %v1128 = vpack.c.b16 %v960, %v956
        %v1129 = vpack.c.b16 %v965, %v961
        %v1130 = vpack.c.b16 %v966, %v962
        %v1131 = vpack.c.b16 %v967, %v963
        %v1132 = vpack.c.b16 %v968, %v964
        %v1133 = vpack.c.b16 %v973, %v969
        %v1134 = vpack.c.b16 %v974, %v970
        %v1135 = vpack.c.b16 %v975, %v971
        %v1136 = vpack.c.b16 %v976, %v972
        %v1137 = vpack.c.b16 %v981, %v977
        %v1138 = vpack.c.b16 %v982, %v978
        %v1139 = vpack.c.b16 %v983, %v979
        %v1140 = vpack.c.b16 %v984, %v980
        %v1141 = vpack.c.b16 %v989, %v985
        %v1142 = vpack.c.b16 %v990, %v986
        %v1143 = vpack.c.b16 %v991, %v987
        %v1144 = vpack.c.b16 %v992, %v988
        %v1145 = vpack.c.b16 %v997, %v993
        %v1146 = vpack.c.b16 %v998, %v994
        %v1147 = vpack.c.b16 %v999, %v995
        %v1148 = vpack.c.b16 %v1000, %v996
        %v1149 = vpack.c.b16 %v1005, %v1001
        %v1150 = vpack.c.b16 %v1006, %v1002
        %v1151 = vpack.c.b16 %v1007, %v1003
        %v1152 = vpack.c.b16 %v1008, %v1004
        %v1153 = vpack.c.b16 %v1013, %v1009
        %v1154 = vpack.c.b16 %v1014, %v1010
        %v1155 = vpack.c.b16 %v1015, %v1011
        %v1156 = vpack.c.b16 %v1016, %v1012
        %v1157 = vpack.c.b16 %v1021, %v1017
        %v1158 = vpack.c.b16 %v1022, %v1018
        %v1159 = vpack.c.b16 %v1023, %v1019
        %v1160 = vpack.c.b16 %v1024, %v1020
        %v1161 = vpack.c.b16 %v1029, %v1025
        %v1162 = vpack.c.b16 %v1030, %v1026
        %v1163 = vpack.c.b16 %v1031, %v1027
        %v1164 = vpack.c.b16 %v1032, %v1028
        %v1165 = vpack.c.b16 %v1037, %v1033
        %v1166 = vpack.c.b16 %v1038, %v1034
        %v1167 = vpack.c.b16 %v1039, %v1035
        %v1168 = vpack.c.b16 %v1040, %v1036
        %1297 = vmatprep.subr.bf16.mxu0 %v1042
        %1298 = vmatpush1.bf16.msra.mxu0 %v1041
        %1299 = vmatprep.subr.bf16.mxu0 %v1046
        %1300 = vmatpush1.bf16.msra.mxu0 %v1045
        %1301 = vmatprep.subr.bf16.mxu0 %v1050
        %1302 = vmatpush1.bf16.msra.mxu0 %v1049
        %1303 = vmatprep.subr.bf16.mxu0 %v1054
        %1304 = vmatpush1.bf16.msra.mxu0 %v1053
        %1305 = vmatprep.subr.bf16.mxu0 %v1058
        %1306 = vmatpush1.bf16.msra.mxu0 %v1057
        %1307 = vmatprep.subr.bf16.mxu0 %v1062
        %1308 = vmatpush1.bf16.msra.mxu0 %v1061
        %1309 = vmatprep.subr.bf16.mxu0 %v1066
        %1310 = vmatpush1.bf16.msra.mxu0 %v1065
        %1311 = vmatprep.subr.bf16.mxu0 %v1070
        %1312 = vmatpush1.bf16.msra.mxu0 %v1069
        %1313 = vmatprep.subr.bf16.mxu0 %v1074
        %1314 = vmatpush1.bf16.msra.mxu0 %v1073
        %1315 = vmatprep.subr.bf16.mxu0 %v1078
        %1316 = vmatpush1.bf16.msra.mxu0 %v1077
        %1317 = vmatprep.subr.bf16.mxu0 %v1082
        %1318 = vmatpush1.bf16.msra.mxu0 %v1081
        %1319 = vmatprep.subr.bf16.mxu0 %v1086
        %1320 = vmatpush1.bf16.msra.mxu0 %v1085
        %1321 = vmatprep.subr.bf16.mxu0 %v1090
        %1322 = vmatpush1.bf16.msra.mxu0 %v1089
        %1323 = vmatprep.subr.bf16.mxu0 %v1094
        %1324 = vmatpush1.bf16.msra.mxu0 %v1093
        %1325 = vmatprep.subr.bf16.mxu0 %v1098
        %1326 = vmatpush1.bf16.msra.mxu0 %v1097
        %1327 = vmatprep.subr.bf16.mxu0 %v1102
        %1328 = vmatpush1.bf16.msra.mxu0 %v1101
        %1329 = vmatprep.mubr.bf16.mxu0 %v650
        %1330 = vmatmul.mubr.bf16.gmra.mrb[0].mxu0 %v649
        %v1331 = vpop.f32.mrb[0].mxu0
        %v1332 = vadd.f32 0.0, %v1331
        %v1333 = vpop.f32.mrb[0].mxu0
        %v1334 = vadd.f32 0.0, %v1333
        %v1335 = vpop.f32.mrb[0].mxu0
        %v1336 = vpop.f32.mrb[0].mxu0
        %1337 = vdwg.mxu0
        %1338 = vmatprep.subr.bf16.mxu0 %v1106
        %1339 = vmatpush1.bf16.msra.mxu0 %v1105
        %1340 = vmatprep.subr.bf16.mxu0 %v1110
        %1341 = vmatpush1.bf16.msra.mxu0 %v1109
        %1342 = vmatprep.subr.bf16.mxu0 %v1114
        %1343 = vmatpush1.bf16.msra.mxu0 %v1113
        %1344 = vmatprep.subr.bf16.mxu0 %v1118
        %1345 = vmatpush1.bf16.msra.mxu0 %v1117
        %1346 = vmatprep.subr.bf16.mxu0 %v1122
        %1347 = vmatpush1.bf16.msra.mxu0 %v1121
        %1348 = vmatprep.subr.bf16.mxu0 %v1126
        %1349 = vmatpush1.bf16.msra.mxu0 %v1125
        %1350 = vmatprep.subr.bf16.mxu0 %v1130
        %1351 = vmatpush1.bf16.msra.mxu0 %v1129
        %1352 = vmatprep.subr.bf16.mxu0 %v1134
        %1353 = vmatpush1.bf16.msra.mxu0 %v1133
        %1354 = vmatprep.subr.bf16.mxu0 %v1138
        %1355 = vmatpush1.bf16.msra.mxu0 %v1137
        %1356 = vmatprep.subr.bf16.mxu0 %v1142
        %1357 = vmatpush1.bf16.msra.mxu0 %v1141
        %1358 = vmatprep.subr.bf16.mxu0 %v1146
        %1359 = vmatpush1.bf16.msra.mxu0 %v1145
        %1360 = vmatprep.subr.bf16.mxu0 %v1150
        %1361 = vmatpush1.bf16.msra.mxu0 %v1149
        %1362 = vmatprep.subr.bf16.mxu0 %v1154
        %1363 = vmatpush1.bf16.msra.mxu0 %v1153
        %1364 = vmatprep.subr.bf16.mxu0 %v1158
        %1365 = vmatpush1.bf16.msra.mxu0 %v1157
        %1366 = vmatprep.subr.bf16.mxu0 %v1162
        %1367 = vmatpush1.bf16.msra.mxu0 %v1161
        %1368 = vmatprep.subr.bf16.mxu0 %v1166
        %1369 = vmatpush1.bf16.msra.mxu0 %v1165
        %1370 = vmatprep.mubr.bf16.mxu0 %v652
        %1371 = vmatmul.mubr.bf16.gmra.mrb[0].mxu0 %v651
        %v1372 = vpop.f32.mrb[0].mxu0
        %v1373 = vadd.f32 %v1332, %v1372
        %v1374 = vpop.f32.mrb[0].mxu0
        %v1375 = vadd.f32 %v1334, %v1374
        %v1376 = vpop.f32.mrb[0].mxu0
        %v1377 = vpop.f32.mrb[0].mxu0
        %1378 = vdwg.mxu0
        %1379 = vmatprep.subr.bf16.mxu0 %v1044
        %1380 = vmatpush1.bf16.msra.mxu0 %v1043
        %1381 = vmatprep.subr.bf16.mxu0 %v1048
        %1382 = vmatpush1.bf16.msra.mxu0 %v1047
        %1383 = vmatprep.subr.bf16.mxu0 %v1052
        %1384 = vmatpush1.bf16.msra.mxu0 %v1051
        %1385 = vmatprep.subr.bf16.mxu0 %v1056
        %1386 = vmatpush1.bf16.msra.mxu0 %v1055
        %1387 = vmatprep.subr.bf16.mxu0 %v1060
        %1388 = vmatpush1.bf16.msra.mxu0 %v1059
        %1389 = vmatprep.subr.bf16.mxu0 %v1064
        %1390 = vmatpush1.bf16.msra.mxu0 %v1063
        %1391 = vmatprep.subr.bf16.mxu0 %v1068
        %1392 = vmatpush1.bf16.msra.mxu0 %v1067
        %1393 = vmatprep.subr.bf16.mxu0 %v1072
        %1394 = vmatpush1.bf16.msra.mxu0 %v1071
        %1395 = vmatprep.subr.bf16.mxu0 %v1076
        %1396 = vmatpush1.bf16.msra.mxu0 %v1075
        %1397 = vmatprep.subr.bf16.mxu0 %v1080
        %1398 = vmatpush1.bf16.msra.mxu0 %v1079
        %1399 = vmatprep.subr.bf16.mxu0 %v1084
        %1400 = vmatpush1.bf16.msra.mxu0 %v1083
        %1401 = vmatprep.subr.bf16.mxu0 %v1088
        %1402 = vmatpush1.bf16.msra.mxu0 %v1087
        %1403 = vmatprep.subr.bf16.mxu0 %v1092
        %1404 = vmatpush1.bf16.msra.mxu0 %v1091
        %1405 = vmatprep.subr.bf16.mxu0 %v1096
        %1406 = vmatpush1.bf16.msra.mxu0 %v1095
        %1407 = vmatprep.subr.bf16.mxu0 %v1100
        %1408 = vmatpush1.bf16.msra.mxu0 %v1099
        %1409 = vmatprep.subr.bf16.mxu0 %v1104
        %1410 = vmatpush1.bf16.msra.mxu0 %v1103
        %1411 = vmatprep.mubr.bf16.mxu0 %v650
        %1412 = vmatmul.mubr.bf16.gmra.mrb[0].mxu0 %v649
        %v1413 = vpop.f32.mrb[0].mxu0
        %v1414 = vadd.f32 0.0, %v1413
        %v1415 = vpop.f32.mrb[0].mxu0
        %v1416 = vadd.f32 0.0, %v1415
        %v1417 = vpop.f32.mrb[0].mxu0
        %v1418 = vpop.f32.mrb[0].mxu0
        %1419 = vdwg.mxu0
        %1420 = vmatprep.subr.bf16.mxu0 %v1108
        %1421 = vmatpush1.bf16.msra.mxu0 %v1107
        %1422 = vmatprep.subr.bf16.mxu0 %v1112
        %1423 = vmatpush1.bf16.msra.mxu0 %v1111
        %1424 = vmatprep.subr.bf16.mxu0 %v1116
        %1425 = vmatpush1.bf16.msra.mxu0 %v1115
        %1426 = vmatprep.subr.bf16.mxu0 %v1120
        %1427 = vmatpush1.bf16.msra.mxu0 %v1119
        %1428 = vmatprep.subr.bf16.mxu0 %v1124
        %1429 = vmatpush1.bf16.msra.mxu0 %v1123
        %1430 = vmatprep.subr.bf16.mxu0 %v1128
        %1431 = vmatpush1.bf16.msra.mxu0 %v1127
        %1432 = vmatprep.subr.bf16.mxu0 %v1132
        %1433 = vmatpush1.bf16.msra.mxu0 %v1131
        %1434 = vmatprep.subr.bf16.mxu0 %v1136
        %1435 = vmatpush1.bf16.msra.mxu0 %v1135
        %1436 = vmatprep.subr.bf16.mxu0 %v1140
        %1437 = vmatpush1.bf16.msra.mxu0 %v1139
        %1438 = vmatprep.subr.bf16.mxu0 %v1144
        %1439 = vmatpush1.bf16.msra.mxu0 %v1143
        %1440 = vmatprep.subr.bf16.mxu0 %v1148
        %1441 = vmatpush1.bf16.msra.mxu0 %v1147
        %1442 = vmatprep.subr.bf16.mxu0 %v1152
        %1443 = vmatpush1.bf16.msra.mxu0 %v1151
        %1444 = vmatprep.subr.bf16.mxu0 %v1156
        %1445 = vmatpush1.bf16.msra.mxu0 %v1155
        %1446 = vmatprep.subr.bf16.mxu0 %v1160
        %1447 = vmatpush1.bf16.msra.mxu0 %v1159
        %1448 = vmatprep.subr.bf16.mxu0 %v1164
        %1449 = vmatpush1.bf16.msra.mxu0 %v1163
        %1450 = vmatprep.subr.bf16.mxu0 %v1168
        %1451 = vmatpush1.bf16.msra.mxu0 %v1167
        %1452 = vmatprep.mubr.bf16.mxu0 %v652
        %1453 = vmatmul.mubr.bf16.gmra.mrb[0].mxu0 %v651
        %v1454 = vpop.f32.mrb[0].mxu0
        %v1455 = vadd.f32 %v1414, %v1454
        %v1456 = vpop.f32.mrb[0].mxu0
        %v1457 = vadd.f32 %v1416, %v1456
        %v1458 = vpop.f32.mrb[0].mxu0
        %v1459 = vpop.f32.mrb[0].mxu0
        %1460 = vdwg.mxu0
        %v1461 = vadd.f32 %v509, %v1373
        %v1462 = vadd.f32 %v510, %v1375
        %v1463 = vadd.f32 %v511, %v1455
        %v1464 = vadd.f32 %v512, %v1457
        %1465 = vst [vmem:[#allocation2] sm:$0xff] %v1461
        %1466 = vst [vmem:[#allocation2 + $0x8] sm:$0xff] %v1462
        %1467 = vst [vmem:[#allocation2 + $0x10] sm:$0xff] %v1463
        %1468 = vst [vmem:[#allocation2 + $0x18] sm:$0xff] %v1464
        %p1469 = scmp.eq.s32.totalorder %s20, 1
        // Predicated region
        $region64: #{dummy_gcn3_forward.2} parent=50 // pred_check
          %p1470 = pneg %p1469
        $region65: #{dummy_gcn3_forward.2} parent=50 // pred_check_branch
          %1472 = sbr.rel (%p1470) target = $region67
        $region66: #{dummy_gcn3_forward.2} parent=50 // pred_region
          %v1473 = vld [vmem:[#allocation2] sm:$0xff]
          %v1474 = vld [vmem:[#allocation2 + $0x8] sm:$0xff]
          %v1475 = vld [vmem:[#allocation2 + $0x10] sm:$0xff]
          %v1476 = vld [vmem:[#allocation2 + $0x18] sm:$0xff]
          loop: start=0, step=1, limit=100
          $region68: #{dummy_gcn3_forward.2} parent=66 // loop_pre_header
            _
          $region69: #{dummy_gcn3_forward.2} parent=66 // loop_header
            %s1478 = sphi 0, %s1482
            %p1479 = scmp.ge.s32.totalorder %s1478, 100
            %v1483 = vphi 0.0, %v1527
            %v1484 = vphi 0.0, %v1528
            %v1485 = vphi 0.0, %v1529
            %v1486 = vphi 0.0, %v1530
          $region70: #{dummy_gcn3_forward.2} parent=66 // loop_header_branch
            %1481 = sbr.rel (%p1479) target = $region74
          $region71: #{dummy_gcn3_forward.2} parent=66 // loop_body
            %s1487 = sld [smem:[#allocation3 + %s1478]]
            %s1488 = sshra.s32 %s1478, 7
            %s1489 = sand.u32 %s1478, 127
            %s1490 = sadd.s32 %s1488, 1
            %s1491 = smul.u32 %s1490, 128
            %s1492 = sshra.s32 %s1478, 7
            %s1493 = sand.u32 %s1478, 127
            %s1494 = sadd.s32 %s1491, %s1493
            %s1495 = sld [smem:[#allocation3 + %s1494]]
            %s1496 = sadd.s32 %s1488, 2
            %s1497 = smul.u32 %s1496, 128
            %s1498 = sadd.s32 %s1497, %s1493
            %s1499 = sld [smem:[#allocation3 + %s1498]]
            %v1500 = vstv %s1487
            %v1501 = vmul.f32 %v1473, %v1500
            %v1502 = vmul.f32 %v1474, %v1500
            %v1503 = vmul.f32 %v1475, %v1500
            %v1504 = vmul.f32 %v1476, %v1500
            %v1505 = vstv %s1495
            %v1506 = vadd.f32 %v1501, %v1505
            %v1507 = vadd.f32 %v1502, %v1505
            %v1508 = vadd.f32 %v1503, %v1505
            %v1509 = vadd.f32 %v1504, %v1505
            %vm1510 = vcmp.gt.f32.partialorder %v1506, 0.0
            %vm1511 = vcmp.gt.f32.partialorder %v1507, 0.0
            %vm1512 = vcmp.gt.f32.partialorder %v1508, 0.0
            %vm1513 = vcmp.gt.f32.partialorder %v1509, 0.0
            %v1514 = vmul.f32 %v1506, 0.01
            %v1515 = vmul.f32 %v1507, 0.01
            %v1516 = vmul.f32 %v1508, 0.01
            %v1517 = vmul.f32 %v1509, 0.01
            %v1518 = vsel %vm1510, %v1506, %v1514
            %v1519 = vsel %vm1511, %v1507, %v1515
            %v1520 = vsel %vm1512, %v1508, %v1516
            %v1521 = vsel %vm1513, %v1509, %v1517
            %v1522 = vstv %s1499
            %v1523 = vmul.f32 %v1518, %v1522
            %v1524 = vmul.f32 %v1519, %v1522
            %v1525 = vmul.f32 %v1520, %v1522
            %v1526 = vmul.f32 %v1521, %v1522
            %v1527 = vadd.f32 %v1483, %v1523
            %v1528 = vadd.f32 %v1484, %v1524
            %v1529 = vadd.f32 %v1485, %v1525
            %v1530 = vadd.f32 %v1486, %v1526
          $region72: #{dummy_gcn3_forward.2} parent=66 // loop_footer
            %s1482 = sadd.s32 1, %s1478
          $region73: #{dummy_gcn3_forward.2} parent=66 // loop_footer_branch
            %1477 = sbr.rel target = $region69
          $region74: #{dummy_gcn3_forward.2} parent=66 // loop_exit
            _
          %1531 = vst [vmem:[%s499] sm:$0xff] %v1483
          %1532 = vst [vmem:[%s499 + $0x8] sm:$0xff] %v1484
          %1533 = vst [vmem:[%s499 + $0x10] sm:$0xff] %v1485
          %1534 = vst [vmem:[%s499 + $0x18] sm:$0xff] %v1486
        $region67: #{dummy_gcn3_forward.2} parent=50 // pred_fallthru
          _
        %s1535 = smul.u32 4, %s19
        %p1536 = scmp.lt.s32.totalorder %s1535, 7
        %s1537 = scalar_select %p1536, %s1535, 7
        %s1538 = smul.addr %s1537, 8
        %s1539 = scalar_lea.vmem %s3, %s1538
        // Predicated region
        $region75: #{dummy_gcn3_forward.2} parent=50 // pred_check
          %p1540 = pneg %p120
        $region76: #{dummy_gcn3_forward.2} parent=50 // pred_check_branch
          %1542 = sbr.rel (%p1540) target = $region78
        $region77: #{dummy_gcn3_forward.2} parent=50 // pred_region
          %s1543 = smul.u32 4, %s19
        $region78: #{dummy_gcn3_forward.2} parent=50 // pred_fallthru
          _
      $region51: #{dummy_gcn3_forward.2} parent=5 // pred_fallthru
        _
      %p1544 = scmp.le.s32.totalorder 2, %s10
      // Predicated region
      $region79: #{dummy_gcn3_forward.2} parent=5 // pred_check
        %p1545 = pneg %p1544
      $region80: #{dummy_gcn3_forward.2} parent=5 // pred_check_branch
        %1547 = sbr.rel (%p1545) target = $region82
      $region81: #{dummy_gcn3_forward.2} parent=5 // pred_region
        %s1548 = ssub.s32 %s10, 2
        // Predicated region
        $region83: #{dummy_gcn3_forward.2} parent=81 // pred_check
          %p1549 = pneg %p126
        $region84: #{dummy_gcn3_forward.2} parent=81 // pred_check_branch
          %1551 = sbr.rel (%p1549) target = $region86
        $region85: #{dummy_gcn3_forward.2} parent=81 // pred_region
          %s1552 = smul.u32 4, %s21
          %p1553 = scmp.lt.s32.totalorder %s1552, 7
          %s1554 = scalar_select %p1553, %s1552, 7
          %s1555 = smul.addr %s1554, 8
          %s1556 = scalar_lea.vmem %s3, %s1555
        $region86: #{dummy_gcn3_forward.2} parent=81 // pred_fallthru
          _
      $region82: #{dummy_gcn3_forward.2} parent=5 // pred_fallthru
        _
    $region6: #{dummy_gcn3_forward.2} parent=1 // loop_footer
      %s14 = sadd.s32 1, %s10
    $region7: #{dummy_gcn3_forward.2} parent=1 // loop_footer_branch
      %9 = sbr.rel target = $region3
    $region8: #{dummy_gcn3_forward.2} parent=1 // loop_exit
      _
    %1557 = vsyncpa [#allocation4], 1
    %s1558 = scalar_lea.sflag [#allocation4], 1
    %1559 = vsyncpa %s1558, 1

</llo_original>
